<compile_context>
chip_gen: v7x
topology: tpu7x:2x2x1
jax: 0.10.0
libtpu: 0.0.40
codegen_flags: <defaults>
</compile_context>

<pallas_src>
import jax
import jax.numpy as jnp
from jax import lax
from jax.experimental import pallas as pl
from jax.experimental.pallas import tpu as pltpu


# ----------------------------- Pallas kernel -------------------------------

def _bilstm_kernel(lens_ref, gx_ref, whh_ref, out_ref):
    # lens_ref: (B,) int32    sequence lengths (SMEM, scalar-prefetched)
    # gx_ref  : (T, Bt, 8H)   precomputed x @ W_ih + b, both directions,
    #                         gate layout [i_f i_b | f_f f_b | g_f g_b | o_f o_b]
    # whh_ref : (2H, 8H)      block-diagonal recurrent weights
    # out_ref : (T, Bt, 2H)   [:, :, :H] = forward, [:, :, H:] = backward
    T, Bt, G = gx_ref.shape
    H2 = G // 4                      # 2H
    H = H2 // 2

    whh = whh_ref[...]                                        # (2H, 8H)

    boff = pl.program_id(0) * Bt     # global batch offset of this block

    # Per-batch-row lengths broadcast to a (Bt, 2H) vector (built once).
    row = lax.broadcasted_iota(jnp.int32, (Bt, H2), 0)
    lens = jnp.zeros((Bt, H2), jnp.int32)
    for b in range(Bt):              # Bt is small & static
        lens = jnp.where(row == b, lens_ref[boff + b], lens)

    # lane < H  -> forward half of the state / output
    is_fwd_half = lax.broadcasted_iota(jnp.int32, (Bt, H2), 1) < H
    # forward vs backward gate columns of the (Bt, 8H) gate vector
    is_fwd_gate = (lax.broadcasted_iota(jnp.int32, (Bt, G), 1) % H2) < H

    h0 = jnp.zeros((Bt, H2), jnp.float32)
    c0 = jnp.zeros((Bt, H2), jnp.float32)

    def step(s, carry):
        h, c = carry                 # (Bt, 2H) each, layout [*_f | *_b]
        t_b = T - 1 - s              # backward-direction time index

        # x-projection contributions: forward lanes use time s, backward
        # lanes use time T-1-s.
        gx = jnp.where(is_fwd_gate, gx_ref[s], gx_ref[t_b])   # (Bt, 8H)

        # single fused recurrent matmul for both directions
        gates = gx + jnp.dot(h, whh, preferred_element_type=jnp.float32)

        i = jax.nn.sigmoid(gates[:, 0 * H2:1 * H2])
        f = jax.nn.sigmoid(gates[:, 1 * H2:2 * H2])
        g = jnp.tanh(gates[:, 2 * H2:3 * H2])
        o = jax.nn.sigmoid(gates[:, 3 * H2:4 * H2])
        c_new = f * c + i * g
        h_new = o * jnp.tanh(c_new)

        # per-direction validity mask from the sequence lengths
        t_vec = jnp.where(is_fwd_half, s, t_b)                # (Bt, 2H) int32
        m = (t_vec < lens).astype(jnp.float32)
        h = m * h_new + (1.0 - m) * h
        c = m * c_new + (1.0 - m) * c

        h_out = m * h                                         # zero when padded
        out_ref[s, :, 0:H] = h_out[:, 0:H]                    # forward  -> time s
        out_ref[t_b, :, H:2 * H] = h_out[:, H:2 * H]          # backward -> time T-1-s
        return h, c

    lax.fori_loop(0, T, step, (h0, c0), unroll=True)


# ------------------------------- wrapper ------------------------------------

def _pick_batch_tile(B):
    if B <= 8:
        return B
    for cand in (64, 32, 16, 8):
        if B % cand == 0:
            return cand
    return B


def _pack_bilstm_weights(params):
    """Combine both directions' PyTorch-layout LSTM weights into:
       W_ih (D, 8H), block-diagonal W_hh (2H, 8H), bias (1, 8H),
       gate layout [i_f i_b | f_f f_b | g_f g_b | o_f o_b]."""
    wih_f, wih_b = params["wih_f"], params["wih_b"]   # (D, 4H)
    whh_f, whh_b = params["whh_f"], params["whh_b"]   # (H, 4H)
    b_f, b_b = params["b_f"], params["b_b"]           # (1, 4H)
    H = whh_f.shape[0]

    def interleave(a_f, a_b):                         # (R,4H),(R,4H) -> (R,8H)
        parts = []
        for g in range(4):
            parts.append(a_f[:, g * H:(g + 1) * H])
            parts.append(a_b[:, g * H:(g + 1) * H])
        return jnp.concatenate(parts, axis=1)

    w_ih = interleave(wih_f, wih_b)                   # (D, 8H)
    bias = interleave(b_f, b_b)                       # (1, 8H)

    zeros_h = jnp.zeros((H, 4 * H), whh_f.dtype)
    w_hh = interleave(jnp.concatenate([whh_f, zeros_h], axis=0),   # rows 0:H  -> h_f
                      jnp.concatenate([zeros_h, whh_b], axis=0))   # rows H:2H -> h_b
    return w_ih, w_hh, bias


@jax.jit
def bilstm_forward(x, masks, params):
    """x: (B, T, D) float32, masks: (B, T) float32 -> output (B, T, 2H)."""
    B, T, D = x.shape
    H = params["whh_f"].shape[0]

    w_ih, w_hh, bias = _pack_bilstm_weights(params)

    # packed-sequence semantics only use the lengths
    lengths = jnp.sum(masks, axis=1).astype(jnp.int32)            # (B,)

    # Hoisted input projection: one big MXU-friendly matmul covering all
    # timesteps and both directions (kept out of the serial recurrence).
    x_t = jnp.transpose(x, (1, 0, 2)).astype(jnp.float32)         # (T, B, D)
    gx = jnp.einsum("tbd,dg->tbg", x_t, w_ih,
                    precision=lax.Precision.HIGHEST) + bias       # (T, B, 8H)

    Bt = _pick_batch_tile(B)
    nb = B // Bt

    grid_spec = pltpu.PrefetchScalarGridSpec(
        num_scalar_prefetch=1,                       # lengths -> SMEM
        grid=(nb,),
        in_specs=[
            pl.BlockSpec((T, Bt, 8 * H), lambda i, lens: (0, i, 0)),   # gx
            pl.BlockSpec((2 * H, 8 * H), lambda i, lens: (0, 0)),      # w_hh
        ],
        out_specs=pl.BlockSpec((T, Bt, 2 * H), lambda i, lens: (0, i, 0)),
    )

    out = pl.pallas_call(
        _bilstm_kernel,
        grid_spec=grid_spec,
        out_shape=jax.ShapeDtypeStruct((T, B, 2 * H), jnp.float32),
        compiler_params=pltpu.CompilerParams(
            dimension_semantics=("parallel",),
            vmem_limit_bytes=32 * 1024 * 1024,
        ),
    )(lengths, gx, w_hh)

    return jnp.transpose(out, (1, 0, 2))                          # (B, T, 2H)


# ------------------------- pure-JAX reference --------------------------------

def bilstm_reference(x, masks, params):
    B, T, D = x.shape
    H = params["whh_f"].shape[0]

    def cell(xt, h, c, wih, whh, b):
        gates = xt @ wih + h @ whh + b
        i = jax.nn.sigmoid(gates[:, :H])
        f = jax.nn.sigmoid(gates[:, H:2 * H])
        g = jnp.tanh(gates[:, 2 * H:3 * H])
        o = jax.nn.sigmoid(gates[:, 3 * H:])
        c_new = f * c + i * g
        return o * jnp.tanh(c_new), c_new

    def run(wih, whh, b, reverse):
        xs = jnp.swapaxes(x, 0, 1)                  # (T, B, D)
        ms = jnp.swapaxes(masks, 0, 1)[:, :, None]  # (T, B, 1)
        if reverse:
            xs, ms = xs[::-1], ms[::-1]

        def step(carry, inp):
            h, c = carry
            xt, mt = inp
            h_new, c_new = cell(xt, h, c, wih, whh, b)
            h = mt * h_new + (1.0 - mt) * h
            c = mt * c_new + (1.0 - mt) * c
            return (h, c), mt * h

        init = (jnp.zeros((B, H), jnp.float32), jnp.zeros((B, H), jnp.float32))
        _, outs = lax.scan(step, init, (xs, ms))
        if reverse:
            outs = outs[::-1]
        return jnp.swapaxes(outs, 0, 1)             # (B, T, H)

    out_f = run(params["wih_f"], params["whh_f"], params["b_f"], False)
    out_b = run(params["wih_b"], params["whh_b"], params["b_b"], True)
    return jnp.concatenate([out_f, out_b], axis=-1)


# ------------------------------- main ----------------------------------------

def init_params(key, input_size, hidden_per_dir):
    """Deterministic init matching PyTorch LSTM parameter shapes.
    Weights pre-transposed to (in, 4H); bias_ih + bias_hh folded into one (1, 4H)."""
    D, H = input_size, hidden_per_dir
    k = 1.0 / jnp.sqrt(jnp.float32(H))
    keys = jax.random.split(key, 6)
    u = lambda kk, shape: jax.random.uniform(kk, shape, jnp.float32, -k, k)
    return {
        "wih_f": u(keys[0], (D, 4 * H)),
        "whh_f": u(keys[1], (H, 4 * H)),
        "b_f":   u(keys[2], (1, 4 * H)),
        "wih_b": u(keys[3], (D, 4 * H)),
        "whh_b": u(keys[4], (H, 4 * H)),
        "b_b":   u(keys[5], (1, 4 * H)),
    }


if __name__ == "__main__":
    B, T, D = 4, 8, 16
    hidden_size = 32          # module hidden_size; bidirectional -> H = 16 per direction
    H = hidden_size // 2

    key = jax.random.PRNGKey(0)
    k_x, k_p = jax.random.split(key)

    x = jax.random.normal(k_x, (B, T, D), jnp.float32)
    lengths = jnp.array([8, 5, 3, 6], jnp.int32)
    masks = (jnp.arange(T)[None, :] < lengths[:, None]).astype(jnp.float32)  # (B, T)

    params = init_params(k_p, D, H)

    out = bilstm_forward(x, masks, params)
    out = jax.block_until_ready(out)

    ref = bilstm_reference(x, masks, params)
    assert out.shape == (B, T, hidden_size)
    assert jnp.allclose(out, ref, atol=1e-4, rtol=1e-4), "Pallas output mismatch vs JAX reference"

    print("KERNEL_OK")
</pallas_src>

<mosaic_0001>
module attributes {stable_mosaic.version = 11 : i64} {
  func.func @_bilstm_kernel(%arg0: i32, %arg1: memref<4xi32, #tpu.memory_space<smem>>, %arg2: memref<8x4x128xf32, #tpu.memory_space<vmem>>, %arg3: memref<32x128xf32, #tpu.memory_space<vmem>>, %arg4: memref<8x4x32xf32, #tpu.memory_space<vmem>>) attributes {dimension_semantics = [#tpu.dimension_semantics<parallel>], iteration_bounds = array<i64: 1>, scalar_prefetch = 1 : i64, scratch_operands = 0 : i64, tpu.core_type = #tpu.core_type<tc>, window_params = [{transform_indices = @transform_0, window_bounds = array<i64: 8, 4, 128>}, {pipeline_mode = #tpu.pipeline_mode<synchronous>, transform_indices = @transform_1, window_bounds = array<i64: 32, 128>}, {transform_indices = @transform_2, window_bounds = array<i64: 8, 4, 32>}]} {
    %c0 = arith.constant 0 : index
    %c0_0 = arith.constant 0 : index
    %0 = vector.load %arg3[%c0, %c0_0] : memref<32x128xf32, #tpu.memory_space<vmem>>, vector<32x128xf32>
    %c4_i32 = arith.constant 4 : i32
    %1 = arith.muli %arg0, %c4_i32 : i32
    %2 = tpu.iota {dimensions = array<i32: 0>} : vector<4x32xi32>
    %c0_i32 = arith.constant 0 : i32
    %3 = vector.broadcast %c0_i32 : i32 to vector<4x32xi32>
    %c0_i32_1 = arith.constant 0 : i32
    %4 = vector.broadcast %c0_i32_1 : i32 to vector<4x32xi32>
    %5 = arith.cmpi eq, %2, %4 : vector<4x32xi32>
    %c0_i32_2 = arith.constant 0 : i32
    %6 = arith.addi %1, %c0_i32_2 : i32
    %7 = arith.index_cast %6 : i32 to index
    %8 = memref.load %arg1[%7] : memref<4xi32, #tpu.memory_space<smem>>
    %9 = vector.broadcast %8 : i32 to vector<4x32xi32>
    %10 = arith.select %5, %9, %3 : vector<4x32xi1>, vector<4x32xi32>
    %c1_i32 = arith.constant 1 : i32
    %11 = vector.broadcast %c1_i32 : i32 to vector<4x32xi32>
    %12 = arith.cmpi eq, %2, %11 : vector<4x32xi32>
    %c1_i32_3 = arith.constant 1 : i32
    %13 = arith.addi %1, %c1_i32_3 : i32
    %14 = arith.index_cast %13 : i32 to index
    %15 = memref.load %arg1[%14] : memref<4xi32, #tpu.memory_space<smem>>
    %16 = vector.broadcast %15 : i32 to vector<4x32xi32>
    %17 = arith.select %12, %16, %10 : vector<4x32xi1>, vector<4x32xi32>
    %c2_i32 = arith.constant 2 : i32
    %18 = vector.broadcast %c2_i32 : i32 to vector<4x32xi32>
    %19 = arith.cmpi eq, %2, %18 : vector<4x32xi32>
    %c2_i32_4 = arith.constant 2 : i32
    %20 = arith.addi %1, %c2_i32_4 : i32
    %21 = arith.index_cast %20 : i32 to index
    %22 = memref.load %arg1[%21] : memref<4xi32, #tpu.memory_space<smem>>
    %23 = vector.broadcast %22 : i32 to vector<4x32xi32>
    %24 = arith.select %19, %23, %17 : vector<4x32xi1>, vector<4x32xi32>
    %c3_i32 = arith.constant 3 : i32
    %25 = vector.broadcast %c3_i32 : i32 to vector<4x32xi32>
    %26 = arith.cmpi eq, %2, %25 : vector<4x32xi32>
    %c3_i32_5 = arith.constant 3 : i32
    %27 = arith.addi %1, %c3_i32_5 : i32
    %28 = arith.index_cast %27 : i32 to index
    %29 = memref.load %arg1[%28] : memref<4xi32, #tpu.memory_space<smem>>
    %30 = vector.broadcast %29 : i32 to vector<4x32xi32>
    %31 = arith.select %26, %30, %24 : vector<4x32xi1>, vector<4x32xi32>
    %32 = tpu.iota {dimensions = array<i32: 1>} : vector<4x32xi32>
    %c16_i32 = arith.constant 16 : i32
    %33 = vector.broadcast %c16_i32 : i32 to vector<4x32xi32>
    %34 = arith.cmpi slt, %32, %33 : vector<4x32xi32>
    %35 = tpu.iota {dimensions = array<i32: 1>} : vector<4x128xi32>
    %c32_i32 = arith.constant 32 : i32
    %c0_i32_6 = arith.constant 0 : i32
    %36 = arith.cmpi eq, %c32_i32, %c0_i32_6 : i32
    %c1_i32_7 = arith.constant 1 : i32
    %37 = arith.select %36, %c1_i32_7, %c32_i32 : i32
    %38 = vector.broadcast %37 : i32 to vector<4x128xi32>
    %39 = arith.remsi %35, %38 : vector<4x128xi32>
    %c0_i32_8 = arith.constant 0 : i32
    %40 = vector.broadcast %c0_i32_8 : i32 to vector<4x128xi32>
    %41 = arith.cmpi ne, %39, %40 : vector<4x128xi32>
    %c0_i32_9 = arith.constant 0 : i32
    %42 = vector.broadcast %c0_i32_9 : i32 to vector<4x128xi32>
    %43 = arith.cmpi slt, %39, %42 : vector<4x128xi32>
    %c0_i32_10 = arith.constant 0 : i32
    %44 = arith.cmpi slt, %37, %c0_i32_10 : i32
    %45 = vector.broadcast %44 : i1 to vector<4x128xi1>
    %46 = vector.broadcast %45 : vector<4x128xi1> to vector<4x128xi1>
    %47 = arith.xori %43, %46 : vector<4x128xi1>
    %48 = arith.andi %47, %41 : vector<4x128xi1>
    %49 = vector.broadcast %37 : i32 to vector<4x128xi32>
    %50 = arith.addi %39, %49 : vector<4x128xi32>
    %51 = arith.select %48, %50, %39 : vector<4x128xi1>, vector<4x128xi32>
    %c16_i32_11 = arith.constant 16 : i32
    %52 = vector.broadcast %c16_i32_11 : i32 to vector<4x128xi32>
    %53 = arith.cmpi slt, %51, %52 : vector<4x128xi32>
    %cst = arith.constant 0.000000e+00 : f32
    %54 = vector.broadcast %cst : f32 to vector<4x32xf32>
    %cst_12 = arith.constant 0.000000e+00 : f32
    %55 = vector.broadcast %cst_12 : f32 to vector<4x32xf32>
    %c0_i32_13 = arith.constant 0 : i32
    %c7_i32 = arith.constant 7 : i32
    %56 = arith.subi %c7_i32, %c0_i32_13 : i32
    %57 = arith.index_cast %c0_i32_13 : i32 to index
    %c0_14 = arith.constant 0 : index
    %c0_15 = arith.constant 0 : index
    %58 = vector.load %arg2[%57, %c0_14, %c0_15] : memref<8x4x128xf32, #tpu.memory_space<vmem>>, vector<1x4x128xf32>
    %59 = vector.shape_cast %58 : vector<1x4x128xf32> to vector<4x128xf32>
    %60 = arith.index_cast %56 : i32 to index
    %c0_16 = arith.constant 0 : index
    %c0_17 = arith.constant 0 : index
    %61 = vector.load %arg2[%60, %c0_16, %c0_17] : memref<8x4x128xf32, #tpu.memory_space<vmem>>, vector<1x4x128xf32>
    %62 = vector.shape_cast %61 : vector<1x4x128xf32> to vector<4x128xf32>
    %63 = arith.select %53, %59, %62 : vector<4x128xi1>, vector<4x128xf32>
    %cst_18 = arith.constant dense<0.000000e+00> : vector<4x128xf32>
    %64 = tpu.matmul %54, %0, %cst_18 {dimension_numbers = #tpu.dot_dimension_numbers<[1], [0], [0], [1], [0, 0, 1, 1], [], []>} : vector<4x32xf32>, vector<32x128xf32>, vector<4x128xf32> -> vector<4x128xf32>
    %65 = arith.addf %63, %64 : vector<4x128xf32>
    %66 = vector.extract_strided_slice %65 {offsets = [0, 0], sizes = [4, 32], strides = [1, 1]} : vector<4x128xf32> to vector<4x32xf32>
    %67 = arith.negf %66 : vector<4x32xf32>
    %68 = math.exp %67 : vector<4x32xf32>
    %cst_19 = arith.constant 1.000000e+00 : f32
    %69 = vector.broadcast %cst_19 : f32 to vector<4x32xf32>
    %70 = arith.addf %69, %68 : vector<4x32xf32>
    %71 = arith.divf %69, %70 : vector<4x32xf32>
    %72 = vector.extract_strided_slice %65 {offsets = [0, 32], sizes = [4, 32], strides = [1, 1]} : vector<4x128xf32> to vector<4x32xf32>
    %73 = arith.negf %72 : vector<4x32xf32>
    %74 = math.exp %73 : vector<4x32xf32>
    %cst_20 = arith.constant 1.000000e+00 : f32
    %75 = vector.broadcast %cst_20 : f32 to vector<4x32xf32>
    %76 = arith.addf %75, %74 : vector<4x32xf32>
    %77 = arith.divf %75, %76 : vector<4x32xf32>
    %78 = vector.extract_strided_slice %65 {offsets = [0, 64], sizes = [4, 32], strides = [1, 1]} : vector<4x128xf32> to vector<4x32xf32>
    %79 = math.tanh %78 : vector<4x32xf32>
    %80 = vector.extract_strided_slice %65 {offsets = [0, 96], sizes = [4, 32], strides = [1, 1]} : vector<4x128xf32> to vector<4x32xf32>
    %81 = arith.negf %80 : vector<4x32xf32>
    %82 = math.exp %81 : vector<4x32xf32>
    %cst_21 = arith.constant 1.000000e+00 : f32
    %83 = vector.broadcast %cst_21 : f32 to vector<4x32xf32>
    %84 = arith.addf %83, %82 : vector<4x32xf32>
    %85 = arith.divf %83, %84 : vector<4x32xf32>
    %86 = arith.mulf %77, %55 : vector<4x32xf32>
    %87 = arith.mulf %71, %79 : vector<4x32xf32>
    %88 = arith.addf %86, %87 : vector<4x32xf32>
    %89 = math.tanh %88 : vector<4x32xf32>
    %90 = arith.mulf %85, %89 : vector<4x32xf32>
    %91 = vector.broadcast %c0_i32_13 : i32 to vector<4x32xi32>
    %92 = vector.broadcast %56 : i32 to vector<4x32xi32>
    %93 = arith.select %34, %91, %92 : vector<4x32xi1>, vector<4x32xi32>
    %94 = arith.cmpi slt, %93, %31 : vector<4x32xi32>
    %95 = arith.extui %94 : vector<4x32xi1> to vector<4x32xi32>
    %96 = arith.sitofp %95 : vector<4x32xi32> to vector<4x32xf32>
    %97 = arith.mulf %96, %90 : vector<4x32xf32>
    %cst_22 = arith.constant 1.000000e+00 : f32
    %98 = vector.broadcast %cst_22 : f32 to vector<4x32xf32>
    %99 = arith.subf %98, %96 : vector<4x32xf32>
    %100 = arith.mulf %99, %54 : vector<4x32xf32>
    %101 = arith.addf %97, %100 : vector<4x32xf32>
    %102 = arith.mulf %96, %88 : vector<4x32xf32>
    %cst_23 = arith.constant 1.000000e+00 : f32
    %103 = vector.broadcast %cst_23 : f32 to vector<4x32xf32>
    %104 = arith.subf %103, %96 : vector<4x32xf32>
    %105 = arith.mulf %104, %55 : vector<4x32xf32>
    %106 = arith.addf %102, %105 : vector<4x32xf32>
    %107 = arith.mulf %96, %101 : vector<4x32xf32>
    %108 = vector.extract_strided_slice %107 {offsets = [0, 0], sizes = [4, 16], strides = [1, 1]} : vector<4x32xf32> to vector<4x16xf32>
    %109 = arith.index_cast %c0_i32_13 : i32 to index
    %c0_24 = arith.constant 0 : index
    %c0_25 = arith.constant 0 : index
    %110 = vector.load %arg4[%109, %c0_24, %c0_25] : memref<8x4x32xf32, #tpu.memory_space<vmem>>, vector<1x4x16xf32>
    %111 = vector.shape_cast %110 : vector<1x4x16xf32> to vector<4x16xf32>
    %112 = vector.shape_cast %108 : vector<4x16xf32> to vector<1x4x16xf32>
    tpu.vector_store %arg4[%109, %c0_24, %c0_25], %112 {strides = array<i32>} : memref<8x4x32xf32, #tpu.memory_space<vmem>>, vector<1x4x16xf32>,
    %113 = vector.extract_strided_slice %107 {offsets = [0, 16], sizes = [4, 16], strides = [1, 1]} : vector<4x32xf32> to vector<4x16xf32>
    %114 = arith.index_cast %56 : i32 to index
    %c0_26 = arith.constant 0 : index
    %c16 = arith.constant 16 : index
    %115 = vector.load %arg4[%114, %c0_26, %c16] : memref<8x4x32xf32, #tpu.memory_space<vmem>>, vector<1x4x16xf32>
    %116 = vector.shape_cast %115 : vector<1x4x16xf32> to vector<4x16xf32>
    %117 = vector.shape_cast %113 : vector<4x16xf32> to vector<1x4x16xf32>
    tpu.vector_store %arg4[%114, %c0_26, %c16], %117 {strides = array<i32>} : memref<8x4x32xf32, #tpu.memory_space<vmem>>, vector<1x4x16xf32>,
    %c1_i32_27 = arith.constant 1 : i32
    %c7_i32_28 = arith.constant 7 : i32
    %118 = arith.subi %c7_i32_28, %c1_i32_27 : i32
    %119 = arith.index_cast %c1_i32_27 : i32 to index
    %c0_29 = arith.constant 0 : index
    %c0_30 = arith.constant 0 : index
    %120 = vector.load %arg2[%119, %c0_29, %c0_30] : memref<8x4x128xf32, #tpu.memory_space<vmem>>, vector<1x4x128xf32>
    %121 = vector.shape_cast %120 : vector<1x4x128xf32> to vector<4x128xf32>
    %122 = arith.index_cast %118 : i32 to index
    %c0_31 = arith.constant 0 : index
    %c0_32 = arith.constant 0 : index
    %123 = vector.load %arg2[%122, %c0_31, %c0_32] : memref<8x4x128xf32, #tpu.memory_space<vmem>>, vector<1x4x128xf32>
    %124 = vector.shape_cast %123 : vector<1x4x128xf32> to vector<4x128xf32>
    %125 = arith.select %53, %121, %124 : vector<4x128xi1>, vector<4x128xf32>
    %cst_33 = arith.constant dense<0.000000e+00> : vector<4x128xf32>
    %126 = tpu.matmul %101, %0, %cst_33 {dimension_numbers = #tpu.dot_dimension_numbers<[1], [0], [0], [1], [0, 0, 1, 1], [], []>} : vector<4x32xf32>, vector<32x128xf32>, vector<4x128xf32> -> vector<4x128xf32>
    %127 = arith.addf %125, %126 : vector<4x128xf32>
    %128 = vector.extract_strided_slice %127 {offsets = [0, 0], sizes = [4, 32], strides = [1, 1]} : vector<4x128xf32> to vector<4x32xf32>
    %129 = arith.negf %128 : vector<4x32xf32>
    %130 = math.exp %129 : vector<4x32xf32>
    %cst_34 = arith.constant 1.000000e+00 : f32
    %131 = vector.broadcast %cst_34 : f32 to vector<4x32xf32>
    %132 = arith.addf %131, %130 : vector<4x32xf32>
    %133 = arith.divf %131, %132 : vector<4x32xf32>
    %134 = vector.extract_strided_slice %127 {offsets = [0, 32], sizes = [4, 32], strides = [1, 1]} : vector<4x128xf32> to vector<4x32xf32>
    %135 = arith.negf %134 : vector<4x32xf32>
    %136 = math.exp %135 : vector<4x32xf32>
    %cst_35 = arith.constant 1.000000e+00 : f32
    %137 = vector.broadcast %cst_35 : f32 to vector<4x32xf32>
    %138 = arith.addf %137, %136 : vector<4x32xf32>
    %139 = arith.divf %137, %138 : vector<4x32xf32>
    %140 = vector.extract_strided_slice %127 {offsets = [0, 64], sizes = [4, 32], strides = [1, 1]} : vector<4x128xf32> to vector<4x32xf32>
    %141 = math.tanh %140 : vector<4x32xf32>
    %142 = vector.extract_strided_slice %127 {offsets = [0, 96], sizes = [4, 32], strides = [1, 1]} : vector<4x128xf32> to vector<4x32xf32>
    %143 = arith.negf %142 : vector<4x32xf32>
    %144 = math.exp %143 : vector<4x32xf32>
    %cst_36 = arith.constant 1.000000e+00 : f32
    %145 = vector.broadcast %cst_36 : f32 to vector<4x32xf32>
    %146 = arith.addf %145, %144 : vector<4x32xf32>
    %147 = arith.divf %145, %146 : vector<4x32xf32>
    %148 = arith.mulf %139, %106 : vector<4x32xf32>
    %149 = arith.mulf %133, %141 : vector<4x32xf32>
    %150 = arith.addf %148, %149 : vector<4x32xf32>
    %151 = math.tanh %150 : vector<4x32xf32>
    %152 = arith.mulf %147, %151 : vector<4x32xf32>
    %153 = vector.broadcast %c1_i32_27 : i32 to vector<4x32xi32>
    %154 = vector.broadcast %118 : i32 to vector<4x32xi32>
    %155 = arith.select %34, %153, %154 : vector<4x32xi1>, vector<4x32xi32>
    %156 = arith.cmpi slt, %155, %31 : vector<4x32xi32>
    %157 = arith.extui %156 : vector<4x32xi1> to vector<4x32xi32>
    %158 = arith.sitofp %157 : vector<4x32xi32> to vector<4x32xf32>
    %159 = arith.mulf %158, %152 : vector<4x32xf32>
    %cst_37 = arith.constant 1.000000e+00 : f32
    %160 = vector.broadcast %cst_37 : f32 to vector<4x32xf32>
    %161 = arith.subf %160, %158 : vector<4x32xf32>
    %162 = arith.mulf %161, %101 : vector<4x32xf32>
    %163 = arith.addf %159, %162 : vector<4x32xf32>
    %164 = arith.mulf %158, %150 : vector<4x32xf32>
    %cst_38 = arith.constant 1.000000e+00 : f32
    %165 = vector.broadcast %cst_38 : f32 to vector<4x32xf32>
    %166 = arith.subf %165, %158 : vector<4x32xf32>
    %167 = arith.mulf %166, %106 : vector<4x32xf32>
    %168 = arith.addf %164, %167 : vector<4x32xf32>
    %169 = arith.mulf %158, %163 : vector<4x32xf32>
    %170 = vector.extract_strided_slice %169 {offsets = [0, 0], sizes = [4, 16], strides = [1, 1]} : vector<4x32xf32> to vector<4x16xf32>
    %171 = arith.index_cast %c1_i32_27 : i32 to index
    %c0_39 = arith.constant 0 : index
    %c0_40 = arith.constant 0 : index
    %172 = vector.load %arg4[%171, %c0_39, %c0_40] : memref<8x4x32xf32, #tpu.memory_space<vmem>>, vector<1x4x16xf32>
    %173 = vector.shape_cast %172 : vector<1x4x16xf32> to vector<4x16xf32>
    %174 = vector.shape_cast %170 : vector<4x16xf32> to vector<1x4x16xf32>
    tpu.vector_store %arg4[%171, %c0_39, %c0_40], %174 {strides = array<i32>} : memref<8x4x32xf32, #tpu.memory_space<vmem>>, vector<1x4x16xf32>,
    %175 = vector.extract_strided_slice %169 {offsets = [0, 16], sizes = [4, 16], strides = [1, 1]} : vector<4x32xf32> to vector<4x16xf32>
    %176 = arith.index_cast %118 : i32 to index
    %c0_41 = arith.constant 0 : index
    %c16_42 = arith.constant 16 : index
    %177 = vector.load %arg4[%176, %c0_41, %c16_42] : memref<8x4x32xf32, #tpu.memory_space<vmem>>, vector<1x4x16xf32>
    %178 = vector.shape_cast %177 : vector<1x4x16xf32> to vector<4x16xf32>
    %179 = vector.shape_cast %175 : vector<4x16xf32> to vector<1x4x16xf32>
    tpu.vector_store %arg4[%176, %c0_41, %c16_42], %179 {strides = array<i32>} : memref<8x4x32xf32, #tpu.memory_space<vmem>>, vector<1x4x16xf32>,
    %c2_i32_43 = arith.constant 2 : i32
    %c7_i32_44 = arith.constant 7 : i32
    %180 = arith.subi %c7_i32_44, %c2_i32_43 : i32
    %181 = arith.index_cast %c2_i32_43 : i32 to index
    %c0_45 = arith.constant 0 : index
    %c0_46 = arith.constant 0 : index
    %182 = vector.load %arg2[%181, %c0_45, %c0_46] : memref<8x4x128xf32, #tpu.memory_space<vmem>>, vector<1x4x128xf32>
    %183 = vector.shape_cast %182 : vector<1x4x128xf32> to vector<4x128xf32>
    %184 = arith.index_cast %180 : i32 to index
    %c0_47 = arith.constant 0 : index
    %c0_48 = arith.constant 0 : index
    %185 = vector.load %arg2[%184, %c0_47, %c0_48] : memref<8x4x128xf32, #tpu.memory_space<vmem>>, vector<1x4x128xf32>
    %186 = vector.shape_cast %185 : vector<1x4x128xf32> to vector<4x128xf32>
    %187 = arith.select %53, %183, %186 : vector<4x128xi1>, vector<4x128xf32>
    %cst_49 = arith.constant dense<0.000000e+00> : vector<4x128xf32>
    %188 = tpu.matmul %163, %0, %cst_49 {dimension_numbers = #tpu.dot_dimension_numbers<[1], [0], [0], [1], [0, 0, 1, 1], [], []>} : vector<4x32xf32>, vector<32x128xf32>, vector<4x128xf32> -> vector<4x128xf32>
    %189 = arith.addf %187, %188 : vector<4x128xf32>
    %190 = vector.extract_strided_slice %189 {offsets = [0, 0], sizes = [4, 32], strides = [1, 1]} : vector<4x128xf32> to vector<4x32xf32>
    %191 = arith.negf %190 : vector<4x32xf32>
    %192 = math.exp %191 : vector<4x32xf32>
    %cst_50 = arith.constant 1.000000e+00 : f32
    %193 = vector.broadcast %cst_50 : f32 to vector<4x32xf32>
    %194 = arith.addf %193, %192 : vector<4x32xf32>
    %195 = arith.divf %193, %194 : vector<4x32xf32>
    %196 = vector.extract_strided_slice %189 {offsets = [0, 32], sizes = [4, 32], strides = [1, 1]} : vector<4x128xf32> to vector<4x32xf32>
    %197 = arith.negf %196 : vector<4x32xf32>
    %198 = math.exp %197 : vector<4x32xf32>
    %cst_51 = arith.constant 1.000000e+00 : f32
    %199 = vector.broadcast %cst_51 : f32 to vector<4x32xf32>
    %200 = arith.addf %199, %198 : vector<4x32xf32>
    %201 = arith.divf %199, %200 : vector<4x32xf32>
    %202 = vector.extract_strided_slice %189 {offsets = [0, 64], sizes = [4, 32], strides = [1, 1]} : vector<4x128xf32> to vector<4x32xf32>
    %203 = math.tanh %202 : vector<4x32xf32>
    %204 = vector.extract_strided_slice %189 {offsets = [0, 96], sizes = [4, 32], strides = [1, 1]} : vector<4x128xf32> to vector<4x32xf32>
    %205 = arith.negf %204 : vector<4x32xf32>
    %206 = math.exp %205 : vector<4x32xf32>
    %cst_52 = arith.constant 1.000000e+00 : f32
    %207 = vector.broadcast %cst_52 : f32 to vector<4x32xf32>
    %208 = arith.addf %207, %206 : vector<4x32xf32>
    %209 = arith.divf %207, %208 : vector<4x32xf32>
    %210 = arith.mulf %201, %168 : vector<4x32xf32>
    %211 = arith.mulf %195, %203 : vector<4x32xf32>
    %212 = arith.addf %210, %211 : vector<4x32xf32>
    %213 = math.tanh %212 : vector<4x32xf32>
    %214 = arith.mulf %209, %213 : vector<4x32xf32>
    %215 = vector.broadcast %c2_i32_43 : i32 to vector<4x32xi32>
    %216 = vector.broadcast %180 : i32 to vector<4x32xi32>
    %217 = arith.select %34, %215, %216 : vector<4x32xi1>, vector<4x32xi32>
    %218 = arith.cmpi slt, %217, %31 : vector<4x32xi32>
    %219 = arith.extui %218 : vector<4x32xi1> to vector<4x32xi32>
    %220 = arith.sitofp %219 : vector<4x32xi32> to vector<4x32xf32>
    %221 = arith.mulf %220, %214 : vector<4x32xf32>
    %cst_53 = arith.constant 1.000000e+00 : f32
    %222 = vector.broadcast %cst_53 : f32 to vector<4x32xf32>
    %223 = arith.subf %222, %220 : vector<4x32xf32>
    %224 = arith.mulf %223, %163 : vector<4x32xf32>
    %225 = arith.addf %221, %224 : vector<4x32xf32>
    %226 = arith.mulf %220, %212 : vector<4x32xf32>
    %cst_54 = arith.constant 1.000000e+00 : f32
    %227 = vector.broadcast %cst_54 : f32 to vector<4x32xf32>
    %228 = arith.subf %227, %220 : vector<4x32xf32>
    %229 = arith.mulf %228, %168 : vector<4x32xf32>
    %230 = arith.addf %226, %229 : vector<4x32xf32>
    %231 = arith.mulf %220, %225 : vector<4x32xf32>
    %232 = vector.extract_strided_slice %231 {offsets = [0, 0], sizes = [4, 16], strides = [1, 1]} : vector<4x32xf32> to vector<4x16xf32>
    %233 = arith.index_cast %c2_i32_43 : i32 to index
    %c0_55 = arith.constant 0 : index
    %c0_56 = arith.constant 0 : index
    %234 = vector.load %arg4[%233, %c0_55, %c0_56] : memref<8x4x32xf32, #tpu.memory_space<vmem>>, vector<1x4x16xf32>
    %235 = vector.shape_cast %234 : vector<1x4x16xf32> to vector<4x16xf32>
    %236 = vector.shape_cast %232 : vector<4x16xf32> to vector<1x4x16xf32>
    tpu.vector_store %arg4[%233, %c0_55, %c0_56], %236 {strides = array<i32>} : memref<8x4x32xf32, #tpu.memory_space<vmem>>, vector<1x4x16xf32>,
    %237 = vector.extract_strided_slice %231 {offsets = [0, 16], sizes = [4, 16], strides = [1, 1]} : vector<4x32xf32> to vector<4x16xf32>
    %238 = arith.index_cast %180 : i32 to index
    %c0_57 = arith.constant 0 : index
    %c16_58 = arith.constant 16 : index
    %239 = vector.load %arg4[%238, %c0_57, %c16_58] : memref<8x4x32xf32, #tpu.memory_space<vmem>>, vector<1x4x16xf32>
    %240 = vector.shape_cast %239 : vector<1x4x16xf32> to vector<4x16xf32>
    %241 = vector.shape_cast %237 : vector<4x16xf32> to vector<1x4x16xf32>
    tpu.vector_store %arg4[%238, %c0_57, %c16_58], %241 {strides = array<i32>} : memref<8x4x32xf32, #tpu.memory_space<vmem>>, vector<1x4x16xf32>,
    %c3_i32_59 = arith.constant 3 : i32
    %c7_i32_60 = arith.constant 7 : i32
    %242 = arith.subi %c7_i32_60, %c3_i32_59 : i32
    %243 = arith.index_cast %c3_i32_59 : i32 to index
    %c0_61 = arith.constant 0 : index
    %c0_62 = arith.constant 0 : index
    %244 = vector.load %arg2[%243, %c0_61, %c0_62] : memref<8x4x128xf32, #tpu.memory_space<vmem>>, vector<1x4x128xf32>
    %245 = vector.shape_cast %244 : vector<1x4x128xf32> to vector<4x128xf32>
    %246 = arith.index_cast %242 : i32 to index
    %c0_63 = arith.constant 0 : index
    %c0_64 = arith.constant 0 : index
    %247 = vector.load %arg2[%246, %c0_63, %c0_64] : memref<8x4x128xf32, #tpu.memory_space<vmem>>, vector<1x4x128xf32>
    %248 = vector.shape_cast %247 : vector<1x4x128xf32> to vector<4x128xf32>
    %249 = arith.select %53, %245, %248 : vector<4x128xi1>, vector<4x128xf32>
    %cst_65 = arith.constant dense<0.000000e+00> : vector<4x128xf32>
    %250 = tpu.matmul %225, %0, %cst_65 {dimension_numbers = #tpu.dot_dimension_numbers<[1], [0], [0], [1], [0, 0, 1, 1], [], []>} : vector<4x32xf32>, vector<32x128xf32>, vector<4x128xf32> -> vector<4x128xf32>
    %251 = arith.addf %249, %250 : vector<4x128xf32>
    %252 = vector.extract_strided_slice %251 {offsets = [0, 0], sizes = [4, 32], strides = [1, 1]} : vector<4x128xf32> to vector<4x32xf32>
    %253 = arith.negf %252 : vector<4x32xf32>
    %254 = math.exp %253 : vector<4x32xf32>
    %cst_66 = arith.constant 1.000000e+00 : f32
    %255 = vector.broadcast %cst_66 : f32 to vector<4x32xf32>
    %256 = arith.addf %255, %254 : vector<4x32xf32>
    %257 = arith.divf %255, %256 : vector<4x32xf32>
    %258 = vector.extract_strided_slice %251 {offsets = [0, 32], sizes = [4, 32], strides = [1, 1]} : vector<4x128xf32> to vector<4x32xf32>
    %259 = arith.negf %258 : vector<4x32xf32>
    %260 = math.exp %259 : vector<4x32xf32>
    %cst_67 = arith.constant 1.000000e+00 : f32
    %261 = vector.broadcast %cst_67 : f32 to vector<4x32xf32>
    %262 = arith.addf %261, %260 : vector<4x32xf32>
    %263 = arith.divf %261, %262 : vector<4x32xf32>
    %264 = vector.extract_strided_slice %251 {offsets = [0, 64], sizes = [4, 32], strides = [1, 1]} : vector<4x128xf32> to vector<4x32xf32>
    %265 = math.tanh %264 : vector<4x32xf32>
    %266 = vector.extract_strided_slice %251 {offsets = [0, 96], sizes = [4, 32], strides = [1, 1]} : vector<4x128xf32> to vector<4x32xf32>
    %267 = arith.negf %266 : vector<4x32xf32>
    %268 = math.exp %267 : vector<4x32xf32>
    %cst_68 = arith.constant 1.000000e+00 : f32
    %269 = vector.broadcast %cst_68 : f32 to vector<4x32xf32>
    %270 = arith.addf %269, %268 : vector<4x32xf32>
    %271 = arith.divf %269, %270 : vector<4x32xf32>
    %272 = arith.mulf %263, %230 : vector<4x32xf32>
    %273 = arith.mulf %257, %265 : vector<4x32xf32>
    %274 = arith.addf %272, %273 : vector<4x32xf32>
    %275 = math.tanh %274 : vector<4x32xf32>
    %276 = arith.mulf %271, %275 : vector<4x32xf32>
    %277 = vector.broadcast %c3_i32_59 : i32 to vector<4x32xi32>
    %278 = vector.broadcast %242 : i32 to vector<4x32xi32>
    %279 = arith.select %34, %277, %278 : vector<4x32xi1>, vector<4x32xi32>
    %280 = arith.cmpi slt, %279, %31 : vector<4x32xi32>
    %281 = arith.extui %280 : vector<4x32xi1> to vector<4x32xi32>
    %282 = arith.sitofp %281 : vector<4x32xi32> to vector<4x32xf32>
    %283 = arith.mulf %282, %276 : vector<4x32xf32>
    %cst_69 = arith.constant 1.000000e+00 : f32
    %284 = vector.broadcast %cst_69 : f32 to vector<4x32xf32>
    %285 = arith.subf %284, %282 : vector<4x32xf32>
    %286 = arith.mulf %285, %225 : vector<4x32xf32>
    %287 = arith.addf %283, %286 : vector<4x32xf32>
    %288 = arith.mulf %282, %274 : vector<4x32xf32>
    %cst_70 = arith.constant 1.000000e+00 : f32
    %289 = vector.broadcast %cst_70 : f32 to vector<4x32xf32>
    %290 = arith.subf %289, %282 : vector<4x32xf32>
    %291 = arith.mulf %290, %230 : vector<4x32xf32>
    %292 = arith.addf %288, %291 : vector<4x32xf32>
    %293 = arith.mulf %282, %287 : vector<4x32xf32>
    %294 = vector.extract_strided_slice %293 {offsets = [0, 0], sizes = [4, 16], strides = [1, 1]} : vector<4x32xf32> to vector<4x16xf32>
    %295 = arith.index_cast %c3_i32_59 : i32 to index
    %c0_71 = arith.constant 0 : index
    %c0_72 = arith.constant 0 : index
    %296 = vector.load %arg4[%295, %c0_71, %c0_72] : memref<8x4x32xf32, #tpu.memory_space<vmem>>, vector<1x4x16xf32>
    %297 = vector.shape_cast %296 : vector<1x4x16xf32> to vector<4x16xf32>
    %298 = vector.shape_cast %294 : vector<4x16xf32> to vector<1x4x16xf32>
    tpu.vector_store %arg4[%295, %c0_71, %c0_72], %298 {strides = array<i32>} : memref<8x4x32xf32, #tpu.memory_space<vmem>>, vector<1x4x16xf32>,
    %299 = vector.extract_strided_slice %293 {offsets = [0, 16], sizes = [4, 16], strides = [1, 1]} : vector<4x32xf32> to vector<4x16xf32>
    %300 = arith.index_cast %242 : i32 to index
    %c0_73 = arith.constant 0 : index
    %c16_74 = arith.constant 16 : index
    %301 = vector.load %arg4[%300, %c0_73, %c16_74] : memref<8x4x32xf32, #tpu.memory_space<vmem>>, vector<1x4x16xf32>
    %302 = vector.shape_cast %301 : vector<1x4x16xf32> to vector<4x16xf32>
    %303 = vector.shape_cast %299 : vector<4x16xf32> to vector<1x4x16xf32>
    tpu.vector_store %arg4[%300, %c0_73, %c16_74], %303 {strides = array<i32>} : memref<8x4x32xf32, #tpu.memory_space<vmem>>, vector<1x4x16xf32>,
    %c4_i32_75 = arith.constant 4 : i32
    %c7_i32_76 = arith.constant 7 : i32
    %304 = arith.subi %c7_i32_76, %c4_i32_75 : i32
    %305 = arith.index_cast %c4_i32_75 : i32 to index
    %c0_77 = arith.constant 0 : index
    %c0_78 = arith.constant 0 : index
    %306 = vector.load %arg2[%305, %c0_77, %c0_78] : memref<8x4x128xf32, #tpu.memory_space<vmem>>, vector<1x4x128xf32>
    %307 = vector.shape_cast %306 : vector<1x4x128xf32> to vector<4x128xf32>
    %308 = arith.index_cast %304 : i32 to index
    %c0_79 = arith.constant 0 : index
    %c0_80 = arith.constant 0 : index
    %309 = vector.load %arg2[%308, %c0_79, %c0_80] : memref<8x4x128xf32, #tpu.memory_space<vmem>>, vector<1x4x128xf32>
    %310 = vector.shape_cast %309 : vector<1x4x128xf32> to vector<4x128xf32>
    %311 = arith.select %53, %307, %310 : vector<4x128xi1>, vector<4x128xf32>
    %cst_81 = arith.constant dense<0.000000e+00> : vector<4x128xf32>
    %312 = tpu.matmul %287, %0, %cst_81 {dimension_numbers = #tpu.dot_dimension_numbers<[1], [0], [0], [1], [0, 0, 1, 1], [], []>} : vector<4x32xf32>, vector<32x128xf32>, vector<4x128xf32> -> vector<4x128xf32>
    %313 = arith.addf %311, %312 : vector<4x128xf32>
    %314 = vector.extract_strided_slice %313 {offsets = [0, 0], sizes = [4, 32], strides = [1, 1]} : vector<4x128xf32> to vector<4x32xf32>
    %315 = arith.negf %314 : vector<4x32xf32>
    %316 = math.exp %315 : vector<4x32xf32>
    %cst_82 = arith.constant 1.000000e+00 : f32
    %317 = vector.broadcast %cst_82 : f32 to vector<4x32xf32>
    %318 = arith.addf %317, %316 : vector<4x32xf32>
    %319 = arith.divf %317, %318 : vector<4x32xf32>
    %320 = vector.extract_strided_slice %313 {offsets = [0, 32], sizes = [4, 32], strides = [1, 1]} : vector<4x128xf32> to vector<4x32xf32>
    %321 = arith.negf %320 : vector<4x32xf32>
    %322 = math.exp %321 : vector<4x32xf32>
    %cst_83 = arith.constant 1.000000e+00 : f32
    %323 = vector.broadcast %cst_83 : f32 to vector<4x32xf32>
    %324 = arith.addf %323, %322 : vector<4x32xf32>
    %325 = arith.divf %323, %324 : vector<4x32xf32>
    %326 = vector.extract_strided_slice %313 {offsets = [0, 64], sizes = [4, 32], strides = [1, 1]} : vector<4x128xf32> to vector<4x32xf32>
    %327 = math.tanh %326 : vector<4x32xf32>
    %328 = vector.extract_strided_slice %313 {offsets = [0, 96], sizes = [4, 32], strides = [1, 1]} : vector<4x128xf32> to vector<4x32xf32>
    %329 = arith.negf %328 : vector<4x32xf32>
    %330 = math.exp %329 : vector<4x32xf32>
    %cst_84 = arith.constant 1.000000e+00 : f32
    %331 = vector.broadcast %cst_84 : f32 to vector<4x32xf32>
    %332 = arith.addf %331, %330 : vector<4x32xf32>
    %333 = arith.divf %331, %332 : vector<4x32xf32>
    %334 = arith.mulf %325, %292 : vector<4x32xf32>
    %335 = arith.mulf %319, %327 : vector<4x32xf32>
    %336 = arith.addf %334, %335 : vector<4x32xf32>
    %337 = math.tanh %336 : vector<4x32xf32>
    %338 = arith.mulf %333, %337 : vector<4x32xf32>
    %339 = vector.broadcast %c4_i32_75 : i32 to vector<4x32xi32>
    %340 = vector.broadcast %304 : i32 to vector<4x32xi32>
    %341 = arith.select %34, %339, %340 : vector<4x32xi1>, vector<4x32xi32>
    %342 = arith.cmpi slt, %341, %31 : vector<4x32xi32>
    %343 = arith.extui %342 : vector<4x32xi1> to vector<4x32xi32>
    %344 = arith.sitofp %343 : vector<4x32xi32> to vector<4x32xf32>
    %345 = arith.mulf %344, %338 : vector<4x32xf32>
    %cst_85 = arith.constant 1.000000e+00 : f32
    %346 = vector.broadcast %cst_85 : f32 to vector<4x32xf32>
    %347 = arith.subf %346, %344 : vector<4x32xf32>
    %348 = arith.mulf %347, %287 : vector<4x32xf32>
    %349 = arith.addf %345, %348 : vector<4x32xf32>
    %350 = arith.mulf %344, %336 : vector<4x32xf32>
    %cst_86 = arith.constant 1.000000e+00 : f32
    %351 = vector.broadcast %cst_86 : f32 to vector<4x32xf32>
    %352 = arith.subf %351, %344 : vector<4x32xf32>
    %353 = arith.mulf %352, %292 : vector<4x32xf32>
    %354 = arith.addf %350, %353 : vector<4x32xf32>
    %355 = arith.mulf %344, %349 : vector<4x32xf32>
    %356 = vector.extract_strided_slice %355 {offsets = [0, 0], sizes = [4, 16], strides = [1, 1]} : vector<4x32xf32> to vector<4x16xf32>
    %357 = arith.index_cast %c4_i32_75 : i32 to index
    %c0_87 = arith.constant 0 : index
    %c0_88 = arith.constant 0 : index
    %358 = vector.load %arg4[%357, %c0_87, %c0_88] : memref<8x4x32xf32, #tpu.memory_space<vmem>>, vector<1x4x16xf32>
    %359 = vector.shape_cast %358 : vector<1x4x16xf32> to vector<4x16xf32>
    %360 = vector.shape_cast %356 : vector<4x16xf32> to vector<1x4x16xf32>
    tpu.vector_store %arg4[%357, %c0_87, %c0_88], %360 {strides = array<i32>} : memref<8x4x32xf32, #tpu.memory_space<vmem>>, vector<1x4x16xf32>,
    %361 = vector.extract_strided_slice %355 {offsets = [0, 16], sizes = [4, 16], strides = [1, 1]} : vector<4x32xf32> to vector<4x16xf32>
    %362 = arith.index_cast %304 : i32 to index
    %c0_89 = arith.constant 0 : index
    %c16_90 = arith.constant 16 : index
    %363 = vector.load %arg4[%362, %c0_89, %c16_90] : memref<8x4x32xf32, #tpu.memory_space<vmem>>, vector<1x4x16xf32>
    %364 = vector.shape_cast %363 : vector<1x4x16xf32> to vector<4x16xf32>
    %365 = vector.shape_cast %361 : vector<4x16xf32> to vector<1x4x16xf32>
    tpu.vector_store %arg4[%362, %c0_89, %c16_90], %365 {strides = array<i32>} : memref<8x4x32xf32, #tpu.memory_space<vmem>>, vector<1x4x16xf32>,
    %c5_i32 = arith.constant 5 : i32
    %c7_i32_91 = arith.constant 7 : i32
    %366 = arith.subi %c7_i32_91, %c5_i32 : i32
    %367 = arith.index_cast %c5_i32 : i32 to index
    %c0_92 = arith.constant 0 : index
    %c0_93 = arith.constant 0 : index
    %368 = vector.load %arg2[%367, %c0_92, %c0_93] : memref<8x4x128xf32, #tpu.memory_space<vmem>>, vector<1x4x128xf32>
    %369 = vector.shape_cast %368 : vector<1x4x128xf32> to vector<4x128xf32>
    %370 = arith.index_cast %366 : i32 to index
    %c0_94 = arith.constant 0 : index
    %c0_95 = arith.constant 0 : index
    %371 = vector.load %arg2[%370, %c0_94, %c0_95] : memref<8x4x128xf32, #tpu.memory_space<vmem>>, vector<1x4x128xf32>
    %372 = vector.shape_cast %371 : vector<1x4x128xf32> to vector<4x128xf32>
    %373 = arith.select %53, %369, %372 : vector<4x128xi1>, vector<4x128xf32>
    %cst_96 = arith.constant dense<0.000000e+00> : vector<4x128xf32>
    %374 = tpu.matmul %349, %0, %cst_96 {dimension_numbers = #tpu.dot_dimension_numbers<[1], [0], [0], [1], [0, 0, 1, 1], [], []>} : vector<4x32xf32>, vector<32x128xf32>, vector<4x128xf32> -> vector<4x128xf32>
    %375 = arith.addf %373, %374 : vector<4x128xf32>
    %376 = vector.extract_strided_slice %375 {offsets = [0, 0], sizes = [4, 32], strides = [1, 1]} : vector<4x128xf32> to vector<4x32xf32>
    %377 = arith.negf %376 : vector<4x32xf32>
    %378 = math.exp %377 : vector<4x32xf32>
    %cst_97 = arith.constant 1.000000e+00 : f32
    %379 = vector.broadcast %cst_97 : f32 to vector<4x32xf32>
    %380 = arith.addf %379, %378 : vector<4x32xf32>
    %381 = arith.divf %379, %380 : vector<4x32xf32>
    %382 = vector.extract_strided_slice %375 {offsets = [0, 32], sizes = [4, 32], strides = [1, 1]} : vector<4x128xf32> to vector<4x32xf32>
    %383 = arith.negf %382 : vector<4x32xf32>
    %384 = math.exp %383 : vector<4x32xf32>
    %cst_98 = arith.constant 1.000000e+00 : f32
    %385 = vector.broadcast %cst_98 : f32 to vector<4x32xf32>
    %386 = arith.addf %385, %384 : vector<4x32xf32>
    %387 = arith.divf %385, %386 : vector<4x32xf32>
    %388 = vector.extract_strided_slice %375 {offsets = [0, 64], sizes = [4, 32], strides = [1, 1]} : vector<4x128xf32> to vector<4x32xf32>
    %389 = math.tanh %388 : vector<4x32xf32>
    %390 = vector.extract_strided_slice %375 {offsets = [0, 96], sizes = [4, 32], strides = [1, 1]} : vector<4x128xf32> to vector<4x32xf32>
    %391 = arith.negf %390 : vector<4x32xf32>
    %392 = math.exp %391 : vector<4x32xf32>
    %cst_99 = arith.constant 1.000000e+00 : f32
    %393 = vector.broadcast %cst_99 : f32 to vector<4x32xf32>
    %394 = arith.addf %393, %392 : vector<4x32xf32>
    %395 = arith.divf %393, %394 : vector<4x32xf32>
    %396 = arith.mulf %387, %354 : vector<4x32xf32>
    %397 = arith.mulf %381, %389 : vector<4x32xf32>
    %398 = arith.addf %396, %397 : vector<4x32xf32>
    %399 = math.tanh %398 : vector<4x32xf32>
    %400 = arith.mulf %395, %399 : vector<4x32xf32>
    %401 = vector.broadcast %c5_i32 : i32 to vector<4x32xi32>
    %402 = vector.broadcast %366 : i32 to vector<4x32xi32>
    %403 = arith.select %34, %401, %402 : vector<4x32xi1>, vector<4x32xi32>
    %404 = arith.cmpi slt, %403, %31 : vector<4x32xi32>
    %405 = arith.extui %404 : vector<4x32xi1> to vector<4x32xi32>
    %406 = arith.sitofp %405 : vector<4x32xi32> to vector<4x32xf32>
    %407 = arith.mulf %406, %400 : vector<4x32xf32>
    %cst_100 = arith.constant 1.000000e+00 : f32
    %408 = vector.broadcast %cst_100 : f32 to vector<4x32xf32>
    %409 = arith.subf %408, %406 : vector<4x32xf32>
    %410 = arith.mulf %409, %349 : vector<4x32xf32>
    %411 = arith.addf %407, %410 : vector<4x32xf32>
    %412 = arith.mulf %406, %398 : vector<4x32xf32>
    %cst_101 = arith.constant 1.000000e+00 : f32
    %413 = vector.broadcast %cst_101 : f32 to vector<4x32xf32>
    %414 = arith.subf %413, %406 : vector<4x32xf32>
    %415 = arith.mulf %414, %354 : vector<4x32xf32>
    %416 = arith.addf %412, %415 : vector<4x32xf32>
    %417 = arith.mulf %406, %411 : vector<4x32xf32>
    %418 = vector.extract_strided_slice %417 {offsets = [0, 0], sizes = [4, 16], strides = [1, 1]} : vector<4x32xf32> to vector<4x16xf32>
    %419 = arith.index_cast %c5_i32 : i32 to index
    %c0_102 = arith.constant 0 : index
    %c0_103 = arith.constant 0 : index
    %420 = vector.load %arg4[%419, %c0_102, %c0_103] : memref<8x4x32xf32, #tpu.memory_space<vmem>>, vector<1x4x16xf32>
    %421 = vector.shape_cast %420 : vector<1x4x16xf32> to vector<4x16xf32>
    %422 = vector.shape_cast %418 : vector<4x16xf32> to vector<1x4x16xf32>
    tpu.vector_store %arg4[%419, %c0_102, %c0_103], %422 {strides = array<i32>} : memref<8x4x32xf32, #tpu.memory_space<vmem>>, vector<1x4x16xf32>,
    %423 = vector.extract_strided_slice %417 {offsets = [0, 16], sizes = [4, 16], strides = [1, 1]} : vector<4x32xf32> to vector<4x16xf32>
    %424 = arith.index_cast %366 : i32 to index
    %c0_104 = arith.constant 0 : index
    %c16_105 = arith.constant 16 : index
    %425 = vector.load %arg4[%424, %c0_104, %c16_105] : memref<8x4x32xf32, #tpu.memory_space<vmem>>, vector<1x4x16xf32>
    %426 = vector.shape_cast %425 : vector<1x4x16xf32> to vector<4x16xf32>
    %427 = vector.shape_cast %423 : vector<4x16xf32> to vector<1x4x16xf32>
    tpu.vector_store %arg4[%424, %c0_104, %c16_105], %427 {strides = array<i32>} : memref<8x4x32xf32, #tpu.memory_space<vmem>>, vector<1x4x16xf32>,
    %c6_i32 = arith.constant 6 : i32
    %c7_i32_106 = arith.constant 7 : i32
    %428 = arith.subi %c7_i32_106, %c6_i32 : i32
    %429 = arith.index_cast %c6_i32 : i32 to index
    %c0_107 = arith.constant 0 : index
    %c0_108 = arith.constant 0 : index
    %430 = vector.load %arg2[%429, %c0_107, %c0_108] : memref<8x4x128xf32, #tpu.memory_space<vmem>>, vector<1x4x128xf32>
    %431 = vector.shape_cast %430 : vector<1x4x128xf32> to vector<4x128xf32>
    %432 = arith.index_cast %428 : i32 to index
    %c0_109 = arith.constant 0 : index
    %c0_110 = arith.constant 0 : index
    %433 = vector.load %arg2[%432, %c0_109, %c0_110] : memref<8x4x128xf32, #tpu.memory_space<vmem>>, vector<1x4x128xf32>
    %434 = vector.shape_cast %433 : vector<1x4x128xf32> to vector<4x128xf32>
    %435 = arith.select %53, %431, %434 : vector<4x128xi1>, vector<4x128xf32>
    %cst_111 = arith.constant dense<0.000000e+00> : vector<4x128xf32>
    %436 = tpu.matmul %411, %0, %cst_111 {dimension_numbers = #tpu.dot_dimension_numbers<[1], [0], [0], [1], [0, 0, 1, 1], [], []>} : vector<4x32xf32>, vector<32x128xf32>, vector<4x128xf32> -> vector<4x128xf32>
    %437 = arith.addf %435, %436 : vector<4x128xf32>
    %438 = vector.extract_strided_slice %437 {offsets = [0, 0], sizes = [4, 32], strides = [1, 1]} : vector<4x128xf32> to vector<4x32xf32>
    %439 = arith.negf %438 : vector<4x32xf32>
    %440 = math.exp %439 : vector<4x32xf32>
    %cst_112 = arith.constant 1.000000e+00 : f32
    %441 = vector.broadcast %cst_112 : f32 to vector<4x32xf32>
    %442 = arith.addf %441, %440 : vector<4x32xf32>
    %443 = arith.divf %441, %442 : vector<4x32xf32>
    %444 = vector.extract_strided_slice %437 {offsets = [0, 32], sizes = [4, 32], strides = [1, 1]} : vector<4x128xf32> to vector<4x32xf32>
    %445 = arith.negf %444 : vector<4x32xf32>
    %446 = math.exp %445 : vector<4x32xf32>
    %cst_113 = arith.constant 1.000000e+00 : f32
    %447 = vector.broadcast %cst_113 : f32 to vector<4x32xf32>
    %448 = arith.addf %447, %446 : vector<4x32xf32>
    %449 = arith.divf %447, %448 : vector<4x32xf32>
    %450 = vector.extract_strided_slice %437 {offsets = [0, 64], sizes = [4, 32], strides = [1, 1]} : vector<4x128xf32> to vector<4x32xf32>
    %451 = math.tanh %450 : vector<4x32xf32>
    %452 = vector.extract_strided_slice %437 {offsets = [0, 96], sizes = [4, 32], strides = [1, 1]} : vector<4x128xf32> to vector<4x32xf32>
    %453 = arith.negf %452 : vector<4x32xf32>
    %454 = math.exp %453 : vector<4x32xf32>
    %cst_114 = arith.constant 1.000000e+00 : f32
    %455 = vector.broadcast %cst_114 : f32 to vector<4x32xf32>
    %456 = arith.addf %455, %454 : vector<4x32xf32>
    %457 = arith.divf %455, %456 : vector<4x32xf32>
    %458 = arith.mulf %449, %416 : vector<4x32xf32>
    %459 = arith.mulf %443, %451 : vector<4x32xf32>
    %460 = arith.addf %458, %459 : vector<4x32xf32>
    %461 = math.tanh %460 : vector<4x32xf32>
    %462 = arith.mulf %457, %461 : vector<4x32xf32>
    %463 = vector.broadcast %c6_i32 : i32 to vector<4x32xi32>
    %464 = vector.broadcast %428 : i32 to vector<4x32xi32>
    %465 = arith.select %34, %463, %464 : vector<4x32xi1>, vector<4x32xi32>
    %466 = arith.cmpi slt, %465, %31 : vector<4x32xi32>
    %467 = arith.extui %466 : vector<4x32xi1> to vector<4x32xi32>
    %468 = arith.sitofp %467 : vector<4x32xi32> to vector<4x32xf32>
    %469 = arith.mulf %468, %462 : vector<4x32xf32>
    %cst_115 = arith.constant 1.000000e+00 : f32
    %470 = vector.broadcast %cst_115 : f32 to vector<4x32xf32>
    %471 = arith.subf %470, %468 : vector<4x32xf32>
    %472 = arith.mulf %471, %411 : vector<4x32xf32>
    %473 = arith.addf %469, %472 : vector<4x32xf32>
    %474 = arith.mulf %468, %460 : vector<4x32xf32>
    %cst_116 = arith.constant 1.000000e+00 : f32
    %475 = vector.broadcast %cst_116 : f32 to vector<4x32xf32>
    %476 = arith.subf %475, %468 : vector<4x32xf32>
    %477 = arith.mulf %476, %416 : vector<4x32xf32>
    %478 = arith.addf %474, %477 : vector<4x32xf32>
    %479 = arith.mulf %468, %473 : vector<4x32xf32>
    %480 = vector.extract_strided_slice %479 {offsets = [0, 0], sizes = [4, 16], strides = [1, 1]} : vector<4x32xf32> to vector<4x16xf32>
    %481 = arith.index_cast %c6_i32 : i32 to index
    %c0_117 = arith.constant 0 : index
    %c0_118 = arith.constant 0 : index
    %482 = vector.load %arg4[%481, %c0_117, %c0_118] : memref<8x4x32xf32, #tpu.memory_space<vmem>>, vector<1x4x16xf32>
    %483 = vector.shape_cast %482 : vector<1x4x16xf32> to vector<4x16xf32>
    %484 = vector.shape_cast %480 : vector<4x16xf32> to vector<1x4x16xf32>
    tpu.vector_store %arg4[%481, %c0_117, %c0_118], %484 {strides = array<i32>} : memref<8x4x32xf32, #tpu.memory_space<vmem>>, vector<1x4x16xf32>,
    %485 = vector.extract_strided_slice %479 {offsets = [0, 16], sizes = [4, 16], strides = [1, 1]} : vector<4x32xf32> to vector<4x16xf32>
    %486 = arith.index_cast %428 : i32 to index
    %c0_119 = arith.constant 0 : index
    %c16_120 = arith.constant 16 : index
    %487 = vector.load %arg4[%486, %c0_119, %c16_120] : memref<8x4x32xf32, #tpu.memory_space<vmem>>, vector<1x4x16xf32>
    %488 = vector.shape_cast %487 : vector<1x4x16xf32> to vector<4x16xf32>
    %489 = vector.shape_cast %485 : vector<4x16xf32> to vector<1x4x16xf32>
    tpu.vector_store %arg4[%486, %c0_119, %c16_120], %489 {strides = array<i32>} : memref<8x4x32xf32, #tpu.memory_space<vmem>>, vector<1x4x16xf32>,
    %c7_i32_121 = arith.constant 7 : i32
    %c7_i32_122 = arith.constant 7 : i32
    %490 = arith.subi %c7_i32_122, %c7_i32_121 : i32
    %491 = arith.index_cast %c7_i32_121 : i32 to index
    %c0_123 = arith.constant 0 : index
    %c0_124 = arith.constant 0 : index
    %492 = vector.load %arg2[%491, %c0_123, %c0_124] : memref<8x4x128xf32, #tpu.memory_space<vmem>>, vector<1x4x128xf32>
    %493 = vector.shape_cast %492 : vector<1x4x128xf32> to vector<4x128xf32>
    %494 = arith.index_cast %490 : i32 to index
    %c0_125 = arith.constant 0 : index
    %c0_126 = arith.constant 0 : index
    %495 = vector.load %arg2[%494, %c0_125, %c0_126] : memref<8x4x128xf32, #tpu.memory_space<vmem>>, vector<1x4x128xf32>
    %496 = vector.shape_cast %495 : vector<1x4x128xf32> to vector<4x128xf32>
    %497 = arith.select %53, %493, %496 : vector<4x128xi1>, vector<4x128xf32>
    %cst_127 = arith.constant dense<0.000000e+00> : vector<4x128xf32>
    %498 = tpu.matmul %473, %0, %cst_127 {dimension_numbers = #tpu.dot_dimension_numbers<[1], [0], [0], [1], [0, 0, 1, 1], [], []>} : vector<4x32xf32>, vector<32x128xf32>, vector<4x128xf32> -> vector<4x128xf32>
    %499 = arith.addf %497, %498 : vector<4x128xf32>
    %500 = vector.extract_strided_slice %499 {offsets = [0, 0], sizes = [4, 32], strides = [1, 1]} : vector<4x128xf32> to vector<4x32xf32>
    %501 = arith.negf %500 : vector<4x32xf32>
    %502 = math.exp %501 : vector<4x32xf32>
    %cst_128 = arith.constant 1.000000e+00 : f32
    %503 = vector.broadcast %cst_128 : f32 to vector<4x32xf32>
    %504 = arith.addf %503, %502 : vector<4x32xf32>
    %505 = arith.divf %503, %504 : vector<4x32xf32>
    %506 = vector.extract_strided_slice %499 {offsets = [0, 32], sizes = [4, 32], strides = [1, 1]} : vector<4x128xf32> to vector<4x32xf32>
    %507 = arith.negf %506 : vector<4x32xf32>
    %508 = math.exp %507 : vector<4x32xf32>
    %cst_129 = arith.constant 1.000000e+00 : f32
    %509 = vector.broadcast %cst_129 : f32 to vector<4x32xf32>
    %510 = arith.addf %509, %508 : vector<4x32xf32>
    %511 = arith.divf %509, %510 : vector<4x32xf32>
    %512 = vector.extract_strided_slice %499 {offsets = [0, 64], sizes = [4, 32], strides = [1, 1]} : vector<4x128xf32> to vector<4x32xf32>
    %513 = math.tanh %512 : vector<4x32xf32>
    %514 = vector.extract_strided_slice %499 {offsets = [0, 96], sizes = [4, 32], strides = [1, 1]} : vector<4x128xf32> to vector<4x32xf32>
    %515 = arith.negf %514 : vector<4x32xf32>
    %516 = math.exp %515 : vector<4x32xf32>
    %cst_130 = arith.constant 1.000000e+00 : f32
    %517 = vector.broadcast %cst_130 : f32 to vector<4x32xf32>
    %518 = arith.addf %517, %516 : vector<4x32xf32>
    %519 = arith.divf %517, %518 : vector<4x32xf32>
    %520 = arith.mulf %511, %478 : vector<4x32xf32>
    %521 = arith.mulf %505, %513 : vector<4x32xf32>
    %522 = arith.addf %520, %521 : vector<4x32xf32>
    %523 = math.tanh %522 : vector<4x32xf32>
    %524 = arith.mulf %519, %523 : vector<4x32xf32>
    %525 = vector.broadcast %c7_i32_121 : i32 to vector<4x32xi32>
    %526 = vector.broadcast %490 : i32 to vector<4x32xi32>
    %527 = arith.select %34, %525, %526 : vector<4x32xi1>, vector<4x32xi32>
    %528 = arith.cmpi slt, %527, %31 : vector<4x32xi32>
    %529 = arith.extui %528 : vector<4x32xi1> to vector<4x32xi32>
    %530 = arith.sitofp %529 : vector<4x32xi32> to vector<4x32xf32>
    %531 = arith.mulf %530, %524 : vector<4x32xf32>
    %cst_131 = arith.constant 1.000000e+00 : f32
    %532 = vector.broadcast %cst_131 : f32 to vector<4x32xf32>
    %533 = arith.subf %532, %530 : vector<4x32xf32>
    %534 = arith.mulf %533, %473 : vector<4x32xf32>
    %535 = arith.addf %531, %534 : vector<4x32xf32>
    %536 = arith.mulf %530, %522 : vector<4x32xf32>
    %cst_132 = arith.constant 1.000000e+00 : f32
    %537 = vector.broadcast %cst_132 : f32 to vector<4x32xf32>
    %538 = arith.subf %537, %530 : vector<4x32xf32>
    %539 = arith.mulf %538, %478 : vector<4x32xf32>
    %540 = arith.addf %536, %539 : vector<4x32xf32>
    %541 = arith.mulf %530, %535 : vector<4x32xf32>
    %542 = vector.extract_strided_slice %541 {offsets = [0, 0], sizes = [4, 16], strides = [1, 1]} : vector<4x32xf32> to vector<4x16xf32>
    %543 = arith.index_cast %c7_i32_121 : i32 to index
    %c0_133 = arith.constant 0 : index
    %c0_134 = arith.constant 0 : index
    %544 = vector.load %arg4[%543, %c0_133, %c0_134] : memref<8x4x32xf32, #tpu.memory_space<vmem>>, vector<1x4x16xf32>
    %545 = vector.shape_cast %544 : vector<1x4x16xf32> to vector<4x16xf32>
    %546 = vector.shape_cast %542 : vector<4x16xf32> to vector<1x4x16xf32>
    tpu.vector_store %arg4[%543, %c0_133, %c0_134], %546 {strides = array<i32>} : memref<8x4x32xf32, #tpu.memory_space<vmem>>, vector<1x4x16xf32>,
    %547 = vector.extract_strided_slice %541 {offsets = [0, 16], sizes = [4, 16], strides = [1, 1]} : vector<4x32xf32> to vector<4x16xf32>
    %548 = arith.index_cast %490 : i32 to index
    %c0_135 = arith.constant 0 : index
    %c16_136 = arith.constant 16 : index
    %549 = vector.load %arg4[%548, %c0_135, %c16_136] : memref<8x4x32xf32, #tpu.memory_space<vmem>>, vector<1x4x16xf32>
    %550 = vector.shape_cast %549 : vector<1x4x16xf32> to vector<4x16xf32>
    %551 = vector.shape_cast %547 : vector<4x16xf32> to vector<1x4x16xf32>
    tpu.vector_store %arg4[%548, %c0_135, %c16_136], %551 {strides = array<i32>} : memref<8x4x32xf32, #tpu.memory_space<vmem>>, vector<1x4x16xf32>,
    %c8_i32 = arith.constant 8 : i32
    return
  }
  func.func @transform_0(%arg0: i32, %arg1: memref<4xi32, #tpu.memory_space<smem>>) -> (i32, i32, i32) {
    %c0_i32 = arith.constant 0 : i32
    %c0_i32_0 = arith.constant 0 : i32
    %c0_i32_1 = arith.constant 0 : i32
    return %c0_i32, %arg0, %c0_i32_0 : i32, i32, i32
  }
  func.func @transform_1(%arg0: i32, %arg1: memref<4xi32, #tpu.memory_space<smem>>) -> (i32, i32) {
    %c0_i32 = arith.constant 0 : i32
    %c0_i32_0 = arith.constant 0 : i32
    %c0_i32_1 = arith.constant 0 : i32
    return %c0_i32, %c0_i32_0 : i32, i32
  }
  func.func @transform_2(%arg0: i32, %arg1: memref<4xi32, #tpu.memory_space<smem>>) -> (i32, i32, i32) {
    %c0_i32 = arith.constant 0 : i32
    %c0_i32_0 = arith.constant 0 : i32
    %c0_i32_1 = arith.constant 0 : i32
    return %c0_i32, %arg0, %c0_i32_0 : i32, i32, i32
  }
}

</mosaic_0001>

<llo_original>
// kernel: bilstm_forward.1
$region0: #{bilstm_forward.1}
  #allocation0 [shape = 'u32[]', space=smem, size = 0x4, offset = 0x4, fixed_abs, tag = 'smem constant byte address 0x4 - core index']
  #allocation1 [shape = 'u32[144,128]{1,0:T(1,128)}', space=vmem, size = 0x12000, scoped, tag = 'internal scratch']
  #allocation2 [shape = 's32[1]{0}', space=sflag, size = 0x4, scoped, tag = 'scoped memory for bilstm_forward.1']
  #allocation3 [shape = 'u8[512]{0}', space=smem, size = 0x200, scoped, tag = 'prefetched SMEM operand 0']
  %s0 = inlined_call_operand.vmem [shape: s32[4], index: 0, kind: input, shape index: {}]
  %s1 = inlined_call_operand.vmem [shape: f32[8,4,128], index: 1, kind: input, shape index: {}]
  %s2 = inlined_call_operand.vmem [shape: f32[32,128], index: 2, kind: input, shape index: {}]
  %s3 = inlined_call_operand.vmem [shape: f32[8,4,32], index: 3, kind: output, shape index: {}]
  %s4 = sld [smem:[#allocation0]]
  $region18: #{bilstm_forward.1} parent=0
    _
  %s6 = ssub.s32 1, %s4
  %s7 = scalar_select 0, %s6, %s4
  %s8 = sshll.u32 %s0, 4
  %s9 = int_to_ptr.vmem [resolvable:$true] %s8
  %11 = dma.vmem_to_smem %s9, 16, [#allocation3], [#allocation2]
  %12 = dma.done [#allocation2], 16
  %13 = sfence
  // Predicated region
  $region2: #{bilstm_forward.1} parent=0 // pred_check
    _
  $region3: #{bilstm_forward.1} parent=0 // pred_check_branch
    %15 = sbr.rel (0) target = $region5
  $region4: #{bilstm_forward.1} parent=0 // pred_region
    _
  $region5: #{bilstm_forward.1} parent=0 // pred_fallthru
    _
  // Predicated region
  $region6: #{bilstm_forward.1} parent=0 // pred_check
    _
  $region7: #{bilstm_forward.1} parent=0 // pred_check_branch
    %17 = sbr.rel (0) target = $region9
  $region8: #{bilstm_forward.1} parent=0 // pred_region
    _
  $region9: #{bilstm_forward.1} parent=0 // pred_fallthru
    _
  %v18 = vld [vmem:[%s2] sm:$0xff]
  %v19 = vld [vmem:[%s2 + $0x8] sm:$0xff]
  %v20 = vld [vmem:[%s2 + $0x10] sm:$0xff]
  %v21 = vld [vmem:[%s2 + $0x18] sm:$0xff]
  %s22 = smul.u32 0, 4
  %v23 = vlaneseq
  %v24 = vshrl.u32 %v23, 7
  %vm25 = vcmp.eq.s32.totalorder %v24, 0
  %s26 = sld [smem:[#allocation3 + %s22]]
  %v27 = vstv %s26
  %v28 = vsel %vm25, %v27, 0
  %vm29 = vcmp.eq.s32.totalorder %v24, 1
  %s30 = sadd.s32 %s22, 1
  %s31 = sld [smem:[#allocation3 + %s30]]
  %v32 = vstv %s31
  %v33 = vsel %vm29, %v32, %v28
  %vm34 = vcmp.eq.s32.totalorder %v24, 2
  %s35 = sadd.s32 %s22, 2
  %s36 = sld [smem:[#allocation3 + %s35]]
  %v37 = vstv %s36
  %v38 = vsel %vm34, %v37, %v33
  %vm39 = vcmp.eq.s32.totalorder %v24, 3
  %s40 = sadd.s32 %s22, 3
  %s41 = sld [smem:[#allocation3 + %s40]]
  %v42 = vstv %s41
  %v43 = vsel %vm39, %v42, %v38
  %v44 = vlaneseq
  %v45 = vand.u32 %v44, 127
  %vm46 = vcmp.lt.s32.totalorder %v45, 16
  %vm47 = vcmp.lt.s32.totalorder %v45, 0
  %v48 = vsub.s32 0, %v45
  %v49 = vsel %vm47, %v48, %v45
  %v50 = vshrl.u32 %v49, 5
  %v51 = vand.u32 %v49, 31
  %v52 = vsub.s32 0, %v51
  %v53 = vsel %vm47, %v52, %v51
  %vm54 = vcmp.ne.s32.totalorder %v53, 0
  %vm55 = vcmp.lt.s32.totalorder %v53, 0
  %vm56 = vmand %vm55, %vm54
  %v57 = vadd.s32 %v53, 32
  %v58 = vsel %vm56, %v57, %v53
  %vm59 = vcmp.lt.s32.totalorder %v58, 16
  %v60 = vld [vmem:[%s1] sm:$0xf]
  %s61 = scalar_lea.vmem %s1, 28
  %v62 = vld [vmem:[%s61] sm:$0xf]
  %v63 = vsel %vm59, %v60, %v62
  %vm64 = vcmask 261120
  %v66 = vsel %vm64, 0.0, 0
  %68 = vmatprep.subr.mxu0 0.0
  %69 = vmatpush1.msra.mxu0 %v18
  %70 = vmatprep.subr.mxu0 0.0
  %71 = vmatpush1.msra.mxu0 %v19
  %72 = vmatprep.subr.mxu0 0.0
  %73 = vmatpush1.msra.mxu0 %v20
  %74 = vmatprep.subr.mxu0 0.0
  %75 = vmatpush1.msra.mxu0 %v21
  %76 = vmatprep.subr.mxu0 0.0
  %77 = vmatpush1.msra.mxu0 0.0
  %78 = vmatprep.subr.mxu0 0.0
  %79 = vmatpush1.msra.mxu0 0.0
  %80 = vmatprep.subr.mxu0 0.0
  %81 = vmatpush1.msra.mxu0 0.0
  %82 = vmatprep.subr.mxu0 0.0
  %83 = vmatpush1.msra.mxu0 0.0
  %84 = vmatprep.subr.mxu0 0.0
  %85 = vmatpush1.msra.mxu0 0.0
  %86 = vmatprep.subr.mxu0 0.0
  %87 = vmatpush1.msra.mxu0 0.0
  %88 = vmatprep.subr.mxu0 0.0
  %89 = vmatpush1.msra.mxu0 0.0
  %90 = vmatprep.subr.mxu0 0.0
  %91 = vmatpush1.msra.mxu0 0.0
  %92 = vmatprep.subr.mxu0 0.0
  %93 = vmatpush1.msra.mxu0 0.0
  %94 = vmatprep.subr.mxu0 0.0
  %95 = vmatpush1.msra.mxu0 0.0
  %96 = vmatprep.subr.mxu0 0.0
  %97 = vmatpush1.msra.mxu0 0.0
  %98 = vmatprep.subr.mxu0 0.0
  %99 = vmatpush1.msra.mxu0 0.0
  %100 = vmatprep.subr.mxu0 0.0
  %101 = vmatpush1.msra.mxu0 0.0
  %102 = vmatprep.subr.mxu0 0.0
  %103 = vmatpush1.msra.mxu0 0.0
  %104 = vmatprep.subr.mxu0 0.0
  %105 = vmatpush1.msra.mxu0 0.0
  %106 = vmatprep.subr.mxu0 0.0
  %107 = vmatpush1.msra.mxu0 0.0
  %108 = vmatprep.subr.mxu0 0.0
  %109 = vmatpush1.msra.mxu0 0.0
  %110 = vmatprep.subr.mxu0 0.0
  %111 = vmatpush1.msra.mxu0 0.0
  %112 = vmatprep.subr.mxu0 0.0
  %113 = vmatpush1.msra.mxu0 0.0
  %114 = vmatprep.subr.mxu0 0.0
  %115 = vmatpush1.msra.mxu0 0.0
  %116 = vmatprep.subr.mxu0 0.0
  %117 = vmatpush1.msra.mxu0 0.0
  %118 = vmatprep.subr.mxu0 0.0
  %119 = vmatpush1.msra.mxu0 0.0
  %120 = vmatprep.subr.mxu0 0.0
  %121 = vmatpush1.msra.mxu0 0.0
  %122 = vmatprep.subr.mxu0 0.0
  %123 = vmatpush1.msra.mxu0 0.0
  %124 = vmatprep.subr.mxu0 0.0
  %125 = vmatpush1.msra.mxu0 0.0
  %126 = vmatprep.subr.mxu0 0.0
  %127 = vmatpush1.msra.mxu0 0.0
  %128 = vmatprep.subr.mxu0 0.0
  %129 = vmatpush1.msra.mxu0 0.0
  %130 = vmatprep.subr.mxu0 0.0
  %131 = vmatpush1.msra.mxu0 0.0
  %132 = vmatprep.mubr.f32.mxu0 0.0
  %133 = vmatmul.mubr.f32.gmra.mrb[0].mxu0 %v66
  %v134 = vpop.f32.mrb[0].mxu0
  %v135 = vadd.f32 0.0, %v134
  %v136 = vpop.f32.mrb[0].mxu0
  %137 = vdwg.mxu0
  %v138 = vadd.f32 %v63, %v135
  %v139 = vxor.u32 %v138, 2147483648
  %v140 = vmul.f32 %v139, 1.442695
  %v141 = vpow.pop %v140
  %v142 = vadd.f32 %v141, 1.0
  %v143 = vrcp.pop %v142
  %v144 = vmul.f32 1.0, %v143
  %v145 = vtanh.pop %v138
  %v146 = vmul.f32 %v144, 0.0
  %148 = vrot.lane.b32.xlu0 %v145, 64
  %v149 = vpop.permute.xlu0 %148
  %v151 = vmul.f32 %v144, %v149
  %153 = vrot.lane.b32.xlu0 %v151, 32
  %v154 = vpop.permute.xlu0 %153
  %v156 = vadd.f32 %v146, %v154
  %v157 = vtanh.pop %v156
  %159 = vrot.lane.b32.xlu0 %v157, 64
  %v160 = vpop.permute.xlu0 %159
  %v162 = vmul.f32 %v144, %v160
  %v163 = vsel %vm46, 0, 7
  %vm164 = vcmp.lt.s32.totalorder %v163, %v43
  %v165 = vsel %vm164, 1, 0
  %v166 = vcvt.s32.f32 %v165
  %168 = vrot.lane.b32.xlu0 %v162, 32
  %v169 = vpop.permute.xlu0 %168
  %v171 = vmul.f32 %v166, %v169
  %v172 = vsub.f32 1.0, %v166
  %v173 = vmul.f32 %v172, 0.0
  %v174 = vadd.f32 %v171, %v173
  %176 = vrot.lane.b32.xlu0 %v156, 96
  %v177 = vpop.permute.xlu0 %176
  %v179 = vmul.f32 %v166, %v177
  %v180 = vadd.f32 %v179, %v173
  %v181 = vmul.f32 %v166, %v174
  %vm182 = vcmask 125952
  %183 = vst.msk [vmem:[%s3] sm:$0xf] %vm182, %v181
  %s184 = scalar_lea.vmem %s3, 28
  %vm185 = vcmask 257152
  %186 = vst.msk [vmem:[%s184] sm:$0xf] %vm185, %v181
  %s187 = scalar_lea.vmem %s1, 4
  %v188 = vld [vmem:[%s187] sm:$0xf]
  %s189 = scalar_lea.vmem %s1, 24
  %v190 = vld [vmem:[%s189] sm:$0xf]
  %v191 = vsel %vm59, %v188, %v190
  %v193 = vsel %vm64, %v174, 0
  %195 = vmatprep.subr.mxu0 0.0
  %196 = vmatpush1.msra.mxu0 %v18
  %197 = vmatprep.subr.mxu0 0.0
  %198 = vmatpush1.msra.mxu0 %v19
  %199 = vmatprep.subr.mxu0 0.0
  %200 = vmatpush1.msra.mxu0 %v20
  %201 = vmatprep.subr.mxu0 0.0
  %202 = vmatpush1.msra.mxu0 %v21
  %203 = vmatprep.subr.mxu0 0.0
  %204 = vmatpush1.msra.mxu0 0.0
  %205 = vmatprep.subr.mxu0 0.0
  %206 = vmatpush1.msra.mxu0 0.0
  %207 = vmatprep.subr.mxu0 0.0
  %208 = vmatpush1.msra.mxu0 0.0
  %209 = vmatprep.subr.mxu0 0.0
  %210 = vmatpush1.msra.mxu0 0.0
  %211 = vmatprep.subr.mxu0 0.0
  %212 = vmatpush1.msra.mxu0 0.0
  %213 = vmatprep.subr.mxu0 0.0
  %214 = vmatpush1.msra.mxu0 0.0
  %215 = vmatprep.subr.mxu0 0.0
  %216 = vmatpush1.msra.mxu0 0.0
  %217 = vmatprep.subr.mxu0 0.0
  %218 = vmatpush1.msra.mxu0 0.0
  %219 = vmatprep.subr.mxu0 0.0
  %220 = vmatpush1.msra.mxu0 0.0
  %221 = vmatprep.subr.mxu0 0.0
  %222 = vmatpush1.msra.mxu0 0.0
  %223 = vmatprep.subr.mxu0 0.0
  %224 = vmatpush1.msra.mxu0 0.0
  %225 = vmatprep.subr.mxu0 0.0
  %226 = vmatpush1.msra.mxu0 0.0
  %227 = vmatprep.subr.mxu0 0.0
  %228 = vmatpush1.msra.mxu0 0.0
  %229 = vmatprep.subr.mxu0 0.0
  %230 = vmatpush1.msra.mxu0 0.0
  %231 = vmatprep.subr.mxu0 0.0
  %232 = vmatpush1.msra.mxu0 0.0
  %233 = vmatprep.subr.mxu0 0.0
  %234 = vmatpush1.msra.mxu0 0.0
  %235 = vmatprep.subr.mxu0 0.0
  %236 = vmatpush1.msra.mxu0 0.0
  %237 = vmatprep.subr.mxu0 0.0
  %238 = vmatpush1.msra.mxu0 0.0
  %239 = vmatprep.subr.mxu0 0.0
  %240 = vmatpush1.msra.mxu0 0.0
  %241 = vmatprep.subr.mxu0 0.0
  %242 = vmatpush1.msra.mxu0 0.0
  %243 = vmatprep.subr.mxu0 0.0
  %244 = vmatpush1.msra.mxu0 0.0
  %245 = vmatprep.subr.mxu0 0.0
  %246 = vmatpush1.msra.mxu0 0.0
  %247 = vmatprep.subr.mxu0 0.0
  %248 = vmatpush1.msra.mxu0 0.0
  %249 = vmatprep.subr.mxu0 0.0
  %250 = vmatpush1.msra.mxu0 0.0
  %251 = vmatprep.subr.mxu0 0.0
  %252 = vmatpush1.msra.mxu0 0.0
  %253 = vmatprep.subr.mxu0 0.0
  %254 = vmatpush1.msra.mxu0 0.0
  %255 = vmatprep.subr.mxu0 0.0
  %256 = vmatpush1.msra.mxu0 0.0
  %257 = vmatprep.subr.mxu0 0.0
  %258 = vmatpush1.msra.mxu0 0.0
  %259 = vmatprep.mubr.f32.mxu0 0.0
  %260 = vmatmul.mubr.f32.gmra.mrb[0].mxu0 %v193
  %v261 = vpop.f32.mrb[0].mxu0
  %v262 = vadd.f32 0.0, %v261
  %v263 = vpop.f32.mrb[0].mxu0
  %264 = vdwg.mxu0
  %v265 = vadd.f32 %v191, %v262
  %v266 = vxor.u32 %v265, 2147483648
  %v267 = vmul.f32 %v266, 1.442695
  %v268 = vpow.pop %v267
  %v269 = vadd.f32 %v268, 1.0
  %v270 = vrcp.pop %v269
  %v271 = vmul.f32 1.0, %v270
  %v272 = vtanh.pop %v265
  %274 = vrot.lane.b32.xlu0 %v180, 32
  %v275 = vpop.permute.xlu0 %274
  %v277 = vmul.f32 %v271, %v275
  %279 = vrot.lane.b32.xlu0 %v272, 64
  %v280 = vpop.permute.xlu0 %279
  %v282 = vmul.f32 %v271, %v280
  %284 = vrot.lane.b32.xlu0 %v282, 32
  %v285 = vpop.permute.xlu0 %284
  %v287 = vadd.f32 %v277, %v285
  %v288 = vtanh.pop %v287
  %290 = vrot.lane.b32.xlu0 %v288, 64
  %v291 = vpop.permute.xlu0 %290
  %v293 = vmul.f32 %v271, %v291
  %v294 = vsel %vm46, 1, 6
  %vm295 = vcmp.lt.s32.totalorder %v294, %v43
  %v296 = vsel %vm295, 1, 0
  %v297 = vcvt.s32.f32 %v296
  %299 = vrot.lane.b32.xlu0 %v293, 32
  %v300 = vpop.permute.xlu0 %299
  %v302 = vmul.f32 %v297, %v300
  %v303 = vsub.f32 1.0, %v297
  %v304 = vmul.f32 %v303, %v174
  %v305 = vadd.f32 %v302, %v304
  %307 = vrot.lane.b32.xlu0 %v287, 96
  %v308 = vpop.permute.xlu0 %307
  %v310 = vmul.f32 %v297, %v308
  %v311 = vmul.f32 %v303, %v180
  %v312 = vadd.f32 %v310, %v311
  %v313 = vmul.f32 %v297, %v305
  %s314 = scalar_lea.vmem %s3, 4
  %315 = vst.msk [vmem:[%s314] sm:$0xf] %vm182, %v313
  %s316 = scalar_lea.vmem %s3, 24
  %317 = vst.msk [vmem:[%s316] sm:$0xf] %vm185, %v313
  %s318 = scalar_lea.vmem %s1, 8
  %v319 = vld [vmem:[%s318] sm:$0xf]
  %s320 = scalar_lea.vmem %s1, 20
  %v321 = vld [vmem:[%s320] sm:$0xf]
  %v322 = vsel %vm59, %v319, %v321
  %v324 = vsel %vm64, %v305, 0
  %326 = vmatprep.subr.mxu0 0.0
  %327 = vmatpush1.msra.mxu0 %v18
  %328 = vmatprep.subr.mxu0 0.0
  %329 = vmatpush1.msra.mxu0 %v19
  %330 = vmatprep.subr.mxu0 0.0
  %331 = vmatpush1.msra.mxu0 %v20
  %332 = vmatprep.subr.mxu0 0.0
  %333 = vmatpush1.msra.mxu0 %v21
  %334 = vmatprep.subr.mxu0 0.0
  %335 = vmatpush1.msra.mxu0 0.0
  %336 = vmatprep.subr.mxu0 0.0
  %337 = vmatpush1.msra.mxu0 0.0
  %338 = vmatprep.subr.mxu0 0.0
  %339 = vmatpush1.msra.mxu0 0.0
  %340 = vmatprep.subr.mxu0 0.0
  %341 = vmatpush1.msra.mxu0 0.0
  %342 = vmatprep.subr.mxu0 0.0
  %343 = vmatpush1.msra.mxu0 0.0
  %344 = vmatprep.subr.mxu0 0.0
  %345 = vmatpush1.msra.mxu0 0.0
  %346 = vmatprep.subr.mxu0 0.0
  %347 = vmatpush1.msra.mxu0 0.0
  %348 = vmatprep.subr.mxu0 0.0
  %349 = vmatpush1.msra.mxu0 0.0
  %350 = vmatprep.subr.mxu0 0.0
  %351 = vmatpush1.msra.mxu0 0.0
  %352 = vmatprep.subr.mxu0 0.0
  %353 = vmatpush1.msra.mxu0 0.0
  %354 = vmatprep.subr.mxu0 0.0
  %355 = vmatpush1.msra.mxu0 0.0
  %356 = vmatprep.subr.mxu0 0.0
  %357 = vmatpush1.msra.mxu0 0.0
  %358 = vmatprep.subr.mxu0 0.0
  %359 = vmatpush1.msra.mxu0 0.0
  %360 = vmatprep.subr.mxu0 0.0
  %361 = vmatpush1.msra.mxu0 0.0
  %362 = vmatprep.subr.mxu0 0.0
  %363 = vmatpush1.msra.mxu0 0.0
  %364 = vmatprep.subr.mxu0 0.0
  %365 = vmatpush1.msra.mxu0 0.0
  %366 = vmatprep.subr.mxu0 0.0
  %367 = vmatpush1.msra.mxu0 0.0
  %368 = vmatprep.subr.mxu0 0.0
  %369 = vmatpush1.msra.mxu0 0.0
  %370 = vmatprep.subr.mxu0 0.0
  %371 = vmatpush1.msra.mxu0 0.0
  %372 = vmatprep.subr.mxu0 0.0
  %373 = vmatpush1.msra.mxu0 0.0
  %374 = vmatprep.subr.mxu0 0.0
  %375 = vmatpush1.msra.mxu0 0.0
  %376 = vmatprep.subr.mxu0 0.0
  %377 = vmatpush1.msra.mxu0 0.0
  %378 = vmatprep.subr.mxu0 0.0
  %379 = vmatpush1.msra.mxu0 0.0
  %380 = vmatprep.subr.mxu0 0.0
  %381 = vmatpush1.msra.mxu0 0.0
  %382 = vmatprep.subr.mxu0 0.0
  %383 = vmatpush1.msra.mxu0 0.0
  %384 = vmatprep.subr.mxu0 0.0
  %385 = vmatpush1.msra.mxu0 0.0
  %386 = vmatprep.subr.mxu0 0.0
  %387 = vmatpush1.msra.mxu0 0.0
  %388 = vmatprep.subr.mxu0 0.0
  %389 = vmatpush1.msra.mxu0 0.0
  %390 = vmatprep.mubr.f32.mxu0 0.0
  %391 = vmatmul.mubr.f32.gmra.mrb[0].mxu0 %v324
  %v392 = vpop.f32.mrb[0].mxu0
  %v393 = vadd.f32 0.0, %v392
  %v394 = vpop.f32.mrb[0].mxu0
  %395 = vdwg.mxu0
  %v396 = vadd.f32 %v322, %v393
  %v397 = vxor.u32 %v396, 2147483648
  %v398 = vmul.f32 %v397, 1.442695
  %v399 = vpow.pop %v398
  %v400 = vadd.f32 %v399, 1.0
  %v401 = vrcp.pop %v400
  %v402 = vmul.f32 1.0, %v401
  %v403 = vtanh.pop %v396
  %405 = vrot.lane.b32.xlu0 %v312, 32
  %v406 = vpop.permute.xlu0 %405
  %v408 = vmul.f32 %v402, %v406
  %410 = vrot.lane.b32.xlu0 %v403, 64
  %v411 = vpop.permute.xlu0 %410
  %v413 = vmul.f32 %v402, %v411
  %415 = vrot.lane.b32.xlu0 %v413, 32
  %v416 = vpop.permute.xlu0 %415
  %v418 = vadd.f32 %v408, %v416
  %v419 = vtanh.pop %v418
  %421 = vrot.lane.b32.xlu0 %v419, 64
  %v422 = vpop.permute.xlu0 %421
  %v424 = vmul.f32 %v402, %v422
  %v425 = vsel %vm46, 2, 5
  %vm426 = vcmp.lt.s32.totalorder %v425, %v43
  %v427 = vsel %vm426, 1, 0
  %v428 = vcvt.s32.f32 %v427
  %430 = vrot.lane.b32.xlu0 %v424, 32
  %v431 = vpop.permute.xlu0 %430
  %v433 = vmul.f32 %v428, %v431
  %v434 = vsub.f32 1.0, %v428
  %v435 = vmul.f32 %v434, %v305
  %v436 = vadd.f32 %v433, %v435
  %438 = vrot.lane.b32.xlu0 %v418, 96
  %v439 = vpop.permute.xlu0 %438
  %v441 = vmul.f32 %v428, %v439
  %v442 = vmul.f32 %v434, %v312
  %v443 = vadd.f32 %v441, %v442
  %v444 = vmul.f32 %v428, %v436
  %s445 = scalar_lea.vmem %s3, 8
  %446 = vst.msk [vmem:[%s445] sm:$0xf] %vm182, %v444
  %s447 = scalar_lea.vmem %s3, 20
  %448 = vst.msk [vmem:[%s447] sm:$0xf] %vm185, %v444
  %s449 = scalar_lea.vmem %s1, 12
  %v450 = vld [vmem:[%s449] sm:$0xf]
  %s451 = scalar_lea.vmem %s1, 16
  %v452 = vld [vmem:[%s451] sm:$0xf]
  %v453 = vsel %vm59, %v450, %v452
  %v455 = vsel %vm64, %v436, 0
  %457 = vmatprep.subr.mxu0 0.0
  %458 = vmatpush1.msra.mxu0 %v18
  %459 = vmatprep.subr.mxu0 0.0
  %460 = vmatpush1.msra.mxu0 %v19
  %461 = vmatprep.subr.mxu0 0.0
  %462 = vmatpush1.msra.mxu0 %v20
  %463 = vmatprep.subr.mxu0 0.0
  %464 = vmatpush1.msra.mxu0 %v21
  %465 = vmatprep.subr.mxu0 0.0
  %466 = vmatpush1.msra.mxu0 0.0
  %467 = vmatprep.subr.mxu0 0.0
  %468 = vmatpush1.msra.mxu0 0.0
  %469 = vmatprep.subr.mxu0 0.0
  %470 = vmatpush1.msra.mxu0 0.0
  %471 = vmatprep.subr.mxu0 0.0
  %472 = vmatpush1.msra.mxu0 0.0
  %473 = vmatprep.subr.mxu0 0.0
  %474 = vmatpush1.msra.mxu0 0.0
  %475 = vmatprep.subr.mxu0 0.0
  %476 = vmatpush1.msra.mxu0 0.0
  %477 = vmatprep.subr.mxu0 0.0
  %478 = vmatpush1.msra.mxu0 0.0
  %479 = vmatprep.subr.mxu0 0.0
  %480 = vmatpush1.msra.mxu0 0.0
  %481 = vmatprep.subr.mxu0 0.0
  %482 = vmatpush1.msra.mxu0 0.0
  %483 = vmatprep.subr.mxu0 0.0
  %484 = vmatpush1.msra.mxu0 0.0
  %485 = vmatprep.subr.mxu0 0.0
  %486 = vmatpush1.msra.mxu0 0.0
  %487 = vmatprep.subr.mxu0 0.0
  %488 = vmatpush1.msra.mxu0 0.0
  %489 = vmatprep.subr.mxu0 0.0
  %490 = vmatpush1.msra.mxu0 0.0
  %491 = vmatprep.subr.mxu0 0.0
  %492 = vmatpush1.msra.mxu0 0.0
  %493 = vmatprep.subr.mxu0 0.0
  %494 = vmatpush1.msra.mxu0 0.0
  %495 = vmatprep.subr.mxu0 0.0
  %496 = vmatpush1.msra.mxu0 0.0
  %497 = vmatprep.subr.mxu0 0.0
  %498 = vmatpush1.msra.mxu0 0.0
  %499 = vmatprep.subr.mxu0 0.0
  %500 = vmatpush1.msra.mxu0 0.0
  %501 = vmatprep.subr.mxu0 0.0
  %502 = vmatpush1.msra.mxu0 0.0
  %503 = vmatprep.subr.mxu0 0.0
  %504 = vmatpush1.msra.mxu0 0.0
  %505 = vmatprep.subr.mxu0 0.0
  %506 = vmatpush1.msra.mxu0 0.0
  %507 = vmatprep.subr.mxu0 0.0
  %508 = vmatpush1.msra.mxu0 0.0
  %509 = vmatprep.subr.mxu0 0.0
  %510 = vmatpush1.msra.mxu0 0.0
  %511 = vmatprep.subr.mxu0 0.0
  %512 = vmatpush1.msra.mxu0 0.0
  %513 = vmatprep.subr.mxu0 0.0
  %514 = vmatpush1.msra.mxu0 0.0
  %515 = vmatprep.subr.mxu0 0.0
  %516 = vmatpush1.msra.mxu0 0.0
  %517 = vmatprep.subr.mxu0 0.0
  %518 = vmatpush1.msra.mxu0 0.0
  %519 = vmatprep.subr.mxu0 0.0
  %520 = vmatpush1.msra.mxu0 0.0
  %521 = vmatprep.mubr.f32.mxu0 0.0
  %522 = vmatmul.mubr.f32.gmra.mrb[0].mxu0 %v455
  %v523 = vpop.f32.mrb[0].mxu0
  %v524 = vadd.f32 0.0, %v523
  %v525 = vpop.f32.mrb[0].mxu0
  %526 = vdwg.mxu0
  %v527 = vadd.f32 %v453, %v524
  %v528 = vxor.u32 %v527, 2147483648
  %v529 = vmul.f32 %v528, 1.442695
  %v530 = vpow.pop %v529
  %v531 = vadd.f32 %v530, 1.0
  %v532 = vrcp.pop %v531
  %v533 = vmul.f32 1.0, %v532
  %v534 = vtanh.pop %v527
  %536 = vrot.lane.b32.xlu0 %v443, 32
  %v537 = vpop.permute.xlu0 %536
  %v539 = vmul.f32 %v533, %v537
  %541 = vrot.lane.b32.xlu0 %v534, 64
  %v542 = vpop.permute.xlu0 %541
  %v544 = vmul.f32 %v533, %v542
  %546 = vrot.lane.b32.xlu0 %v544, 32
  %v547 = vpop.permute.xlu0 %546
  %v549 = vadd.f32 %v539, %v547
  %v550 = vtanh.pop %v549
  %552 = vrot.lane.b32.xlu0 %v550, 64
  %v553 = vpop.permute.xlu0 %552
  %v555 = vmul.f32 %v533, %v553
  %v556 = vsel %vm46, 3, 4
  %vm557 = vcmp.lt.s32.totalorder %v556, %v43
  %v558 = vsel %vm557, 1, 0
  %v559 = vcvt.s32.f32 %v558
  %561 = vrot.lane.b32.xlu0 %v555, 32
  %v562 = vpop.permute.xlu0 %561
  %v564 = vmul.f32 %v559, %v562
  %v565 = vsub.f32 1.0, %v559
  %v566 = vmul.f32 %v565, %v436
  %v567 = vadd.f32 %v564, %v566
  %569 = vrot.lane.b32.xlu0 %v549, 96
  %v570 = vpop.permute.xlu0 %569
  %v572 = vmul.f32 %v559, %v570
  %v573 = vmul.f32 %v565, %v443
  %v574 = vadd.f32 %v572, %v573
  %v575 = vmul.f32 %v559, %v567
  %s576 = scalar_lea.vmem %s3, 12
  %577 = vst.msk [vmem:[%s576] sm:$0xf] %vm182, %v575
  %s578 = scalar_lea.vmem %s3, 16
  %579 = vst.msk [vmem:[%s578] sm:$0xf] %vm185, %v575
  %v580 = vld [vmem:[%s451] sm:$0xf]
  %v581 = vld [vmem:[%s449] sm:$0xf]
  %v582 = vsel %vm59, %v580, %v581
  %v584 = vsel %vm64, %v567, 0
  %586 = vmatprep.subr.mxu0 0.0
  %587 = vmatpush1.msra.mxu0 %v18
  %588 = vmatprep.subr.mxu0 0.0
  %589 = vmatpush1.msra.mxu0 %v19
  %590 = vmatprep.subr.mxu0 0.0
  %591 = vmatpush1.msra.mxu0 %v20
  %592 = vmatprep.subr.mxu0 0.0
  %593 = vmatpush1.msra.mxu0 %v21
  %594 = vmatprep.subr.mxu0 0.0
  %595 = vmatpush1.msra.mxu0 0.0
  %596 = vmatprep.subr.mxu0 0.0
  %597 = vmatpush1.msra.mxu0 0.0
  %598 = vmatprep.subr.mxu0 0.0
  %599 = vmatpush1.msra.mxu0 0.0
  %600 = vmatprep.subr.mxu0 0.0
  %601 = vmatpush1.msra.mxu0 0.0
  %602 = vmatprep.subr.mxu0 0.0
  %603 = vmatpush1.msra.mxu0 0.0
  %604 = vmatprep.subr.mxu0 0.0
  %605 = vmatpush1.msra.mxu0 0.0
  %606 = vmatprep.subr.mxu0 0.0
  %607 = vmatpush1.msra.mxu0 0.0
  %608 = vmatprep.subr.mxu0 0.0
  %609 = vmatpush1.msra.mxu0 0.0
  %610 = vmatprep.subr.mxu0 0.0
  %611 = vmatpush1.msra.mxu0 0.0
  %612 = vmatprep.subr.mxu0 0.0
  %613 = vmatpush1.msra.mxu0 0.0
  %614 = vmatprep.subr.mxu0 0.0
  %615 = vmatpush1.msra.mxu0 0.0
  %616 = vmatprep.subr.mxu0 0.0
  %617 = vmatpush1.msra.mxu0 0.0
  %618 = vmatprep.subr.mxu0 0.0
  %619 = vmatpush1.msra.mxu0 0.0
  %620 = vmatprep.subr.mxu0 0.0
  %621 = vmatpush1.msra.mxu0 0.0
  %622 = vmatprep.subr.mxu0 0.0
  %623 = vmatpush1.msra.mxu0 0.0
  %624 = vmatprep.subr.mxu0 0.0
  %625 = vmatpush1.msra.mxu0 0.0
  %626 = vmatprep.subr.mxu0 0.0
  %627 = vmatpush1.msra.mxu0 0.0
  %628 = vmatprep.subr.mxu0 0.0
  %629 = vmatpush1.msra.mxu0 0.0
  %630 = vmatprep.subr.mxu0 0.0
  %631 = vmatpush1.msra.mxu0 0.0
  %632 = vmatprep.subr.mxu0 0.0
  %633 = vmatpush1.msra.mxu0 0.0
  %634 = vmatprep.subr.mxu0 0.0
  %635 = vmatpush1.msra.mxu0 0.0
  %636 = vmatprep.subr.mxu0 0.0
  %637 = vmatpush1.msra.mxu0 0.0
  %638 = vmatprep.subr.mxu0 0.0
  %639 = vmatpush1.msra.mxu0 0.0
  %640 = vmatprep.subr.mxu0 0.0
  %641 = vmatpush1.msra.mxu0 0.0
  %642 = vmatprep.subr.mxu0 0.0
  %643 = vmatpush1.msra.mxu0 0.0
  %644 = vmatprep.subr.mxu0 0.0
  %645 = vmatpush1.msra.mxu0 0.0
  %646 = vmatprep.subr.mxu0 0.0
  %647 = vmatpush1.msra.mxu0 0.0
  %648 = vmatprep.subr.mxu0 0.0
  %649 = vmatpush1.msra.mxu0 0.0
  %650 = vmatprep.mubr.f32.mxu0 0.0
  %651 = vmatmul.mubr.f32.gmra.mrb[0].mxu0 %v584
  %v652 = vpop.f32.mrb[0].mxu0
  %v653 = vadd.f32 0.0, %v652
  %v654 = vpop.f32.mrb[0].mxu0
  %655 = vdwg.mxu0
  %v656 = vadd.f32 %v582, %v653
  %v657 = vxor.u32 %v656, 2147483648
  %v658 = vmul.f32 %v657, 1.442695
  %v659 = vpow.pop %v658
  %v660 = vadd.f32 %v659, 1.0
  %v661 = vrcp.pop %v660
  %v662 = vmul.f32 1.0, %v661
  %v663 = vtanh.pop %v656
  %665 = vrot.lane.b32.xlu0 %v574, 32
  %v666 = vpop.permute.xlu0 %665
  %v668 = vmul.f32 %v662, %v666
  %670 = vrot.lane.b32.xlu0 %v663, 64
  %v671 = vpop.permute.xlu0 %670
  %v673 = vmul.f32 %v662, %v671
  %675 = vrot.lane.b32.xlu0 %v673, 32
  %v676 = vpop.permute.xlu0 %675
  %v678 = vadd.f32 %v668, %v676
  %v679 = vtanh.pop %v678
  %681 = vrot.lane.b32.xlu0 %v679, 64
  %v682 = vpop.permute.xlu0 %681
  %v684 = vmul.f32 %v662, %v682
  %v685 = vsel %vm46, 4, 3
  %vm686 = vcmp.lt.s32.totalorder %v685, %v43
  %v687 = vsel %vm686, 1, 0
  %v688 = vcvt.s32.f32 %v687
  %690 = vrot.lane.b32.xlu0 %v684, 32
  %v691 = vpop.permute.xlu0 %690
  %v693 = vmul.f32 %v688, %v691
  %v694 = vsub.f32 1.0, %v688
  %v695 = vmul.f32 %v694, %v567
  %v696 = vadd.f32 %v693, %v695
  %698 = vrot.lane.b32.xlu0 %v678, 96
  %v699 = vpop.permute.xlu0 %698
  %v701 = vmul.f32 %v688, %v699
  %v702 = vmul.f32 %v694, %v574
  %v703 = vadd.f32 %v701, %v702
  %v704 = vmul.f32 %v688, %v696
  %705 = vst.msk [vmem:[%s578] sm:$0xf] %vm182, %v704
  %706 = vst.msk [vmem:[%s576] sm:$0xf] %vm185, %v704
  %v707 = vld [vmem:[%s320] sm:$0xf]
  %v708 = vld [vmem:[%s318] sm:$0xf]
  %v709 = vsel %vm59, %v707, %v708
  %v711 = vsel %vm64, %v696, 0
  %713 = vmatprep.subr.mxu0 0.0
  %714 = vmatpush1.msra.mxu0 %v18
  %715 = vmatprep.subr.mxu0 0.0
  %716 = vmatpush1.msra.mxu0 %v19
  %717 = vmatprep.subr.mxu0 0.0
  %718 = vmatpush1.msra.mxu0 %v20
  %719 = vmatprep.subr.mxu0 0.0
  %720 = vmatpush1.msra.mxu0 %v21
  %721 = vmatprep.subr.mxu0 0.0
  %722 = vmatpush1.msra.mxu0 0.0
  %723 = vmatprep.subr.mxu0 0.0
  %724 = vmatpush1.msra.mxu0 0.0
  %725 = vmatprep.subr.mxu0 0.0
  %726 = vmatpush1.msra.mxu0 0.0
  %727 = vmatprep.subr.mxu0 0.0
  %728 = vmatpush1.msra.mxu0 0.0
  %729 = vmatprep.subr.mxu0 0.0
  %730 = vmatpush1.msra.mxu0 0.0
  %731 = vmatprep.subr.mxu0 0.0
  %732 = vmatpush1.msra.mxu0 0.0
  %733 = vmatprep.subr.mxu0 0.0
  %734 = vmatpush1.msra.mxu0 0.0
  %735 = vmatprep.subr.mxu0 0.0
  %736 = vmatpush1.msra.mxu0 0.0
  %737 = vmatprep.subr.mxu0 0.0
  %738 = vmatpush1.msra.mxu0 0.0
  %739 = vmatprep.subr.mxu0 0.0
  %740 = vmatpush1.msra.mxu0 0.0
  %741 = vmatprep.subr.mxu0 0.0
  %742 = vmatpush1.msra.mxu0 0.0
  %743 = vmatprep.subr.mxu0 0.0
  %744 = vmatpush1.msra.mxu0 0.0
  %745 = vmatprep.subr.mxu0 0.0
  %746 = vmatpush1.msra.mxu0 0.0
  %747 = vmatprep.subr.mxu0 0.0
  %748 = vmatpush1.msra.mxu0 0.0
  %749 = vmatprep.subr.mxu0 0.0
  %750 = vmatpush1.msra.mxu0 0.0
  %751 = vmatprep.subr.mxu0 0.0
  %752 = vmatpush1.msra.mxu0 0.0
  %753 = vmatprep.subr.mxu0 0.0
  %754 = vmatpush1.msra.mxu0 0.0
  %755 = vmatprep.subr.mxu0 0.0
  %756 = vmatpush1.msra.mxu0 0.0
  %757 = vmatprep.subr.mxu0 0.0
  %758 = vmatpush1.msra.mxu0 0.0
  %759 = vmatprep.subr.mxu0 0.0
  %760 = vmatpush1.msra.mxu0 0.0
  %761 = vmatprep.subr.mxu0 0.0
  %762 = vmatpush1.msra.mxu0 0.0
  %763 = vmatprep.subr.mxu0 0.0
  %764 = vmatpush1.msra.mxu0 0.0
  %765 = vmatprep.subr.mxu0 0.0
  %766 = vmatpush1.msra.mxu0 0.0
  %767 = vmatprep.subr.mxu0 0.0
  %768 = vmatpush1.msra.mxu0 0.0
  %769 = vmatprep.subr.mxu0 0.0
  %770 = vmatpush1.msra.mxu0 0.0
  %771 = vmatprep.subr.mxu0 0.0
  %772 = vmatpush1.msra.mxu0 0.0
  %773 = vmatprep.subr.mxu0 0.0
  %774 = vmatpush1.msra.mxu0 0.0
  %775 = vmatprep.subr.mxu0 0.0
  %776 = vmatpush1.msra.mxu0 0.0
  %777 = vmatprep.mubr.f32.mxu0 0.0
  %778 = vmatmul.mubr.f32.gmra.mrb[0].mxu0 %v711
  %v779 = vpop.f32.mrb[0].mxu0
  %v780 = vadd.f32 0.0, %v779
  %v781 = vpop.f32.mrb[0].mxu0
  %782 = vdwg.mxu0
  %v783 = vadd.f32 %v709, %v780
  %v784 = vxor.u32 %v783, 2147483648
  %v785 = vmul.f32 %v784, 1.442695
  %v786 = vpow.pop %v785
  %v787 = vadd.f32 %v786, 1.0
  %v788 = vrcp.pop %v787
  %v789 = vmul.f32 1.0, %v788
  %v790 = vtanh.pop %v783
  %792 = vrot.lane.b32.xlu0 %v703, 32
  %v793 = vpop.permute.xlu0 %792
  %v795 = vmul.f32 %v789, %v793
  %797 = vrot.lane.b32.xlu0 %v790, 64
  %v798 = vpop.permute.xlu0 %797
  %v800 = vmul.f32 %v789, %v798
  %802 = vrot.lane.b32.xlu0 %v800, 32
  %v803 = vpop.permute.xlu0 %802
  %v805 = vadd.f32 %v795, %v803
  %v806 = vtanh.pop %v805
  %808 = vrot.lane.b32.xlu0 %v806, 64
  %v809 = vpop.permute.xlu0 %808
  %v811 = vmul.f32 %v789, %v809
  %v812 = vsel %vm46, 5, 2
  %vm813 = vcmp.lt.s32.totalorder %v812, %v43
  %v814 = vsel %vm813, 1, 0
  %v815 = vcvt.s32.f32 %v814
  %817 = vrot.lane.b32.xlu0 %v811, 32
  %v818 = vpop.permute.xlu0 %817
  %v820 = vmul.f32 %v815, %v818
  %v821 = vsub.f32 1.0, %v815
  %v822 = vmul.f32 %v821, %v696
  %v823 = vadd.f32 %v820, %v822
  %825 = vrot.lane.b32.xlu0 %v805, 96
  %v826 = vpop.permute.xlu0 %825
  %v828 = vmul.f32 %v815, %v826
  %v829 = vmul.f32 %v821, %v703
  %v830 = vadd.f32 %v828, %v829
  %v831 = vmul.f32 %v815, %v823
  %832 = vst.msk [vmem:[%s447] sm:$0xf] %vm182, %v831
  %833 = vst.msk [vmem:[%s445] sm:$0xf] %vm185, %v831
  %v834 = vld [vmem:[%s189] sm:$0xf]
  %v835 = vld [vmem:[%s187] sm:$0xf]
  %v836 = vsel %vm59, %v834, %v835
  %v838 = vsel %vm64, %v823, 0
  %840 = vmatprep.subr.mxu0 0.0
  %841 = vmatpush1.msra.mxu0 %v18
  %842 = vmatprep.subr.mxu0 0.0
  %843 = vmatpush1.msra.mxu0 %v19
  %844 = vmatprep.subr.mxu0 0.0
  %845 = vmatpush1.msra.mxu0 %v20
  %846 = vmatprep.subr.mxu0 0.0
  %847 = vmatpush1.msra.mxu0 %v21
  %848 = vmatprep.subr.mxu0 0.0
  %849 = vmatpush1.msra.mxu0 0.0
  %850 = vmatprep.subr.mxu0 0.0
  %851 = vmatpush1.msra.mxu0 0.0
  %852 = vmatprep.subr.mxu0 0.0
  %853 = vmatpush1.msra.mxu0 0.0
  %854 = vmatprep.subr.mxu0 0.0
  %855 = vmatpush1.msra.mxu0 0.0
  %856 = vmatprep.subr.mxu0 0.0
  %857 = vmatpush1.msra.mxu0 0.0
  %858 = vmatprep.subr.mxu0 0.0
  %859 = vmatpush1.msra.mxu0 0.0
  %860 = vmatprep.subr.mxu0 0.0
  %861 = vmatpush1.msra.mxu0 0.0
  %862 = vmatprep.subr.mxu0 0.0
  %863 = vmatpush1.msra.mxu0 0.0
  %864 = vmatprep.subr.mxu0 0.0
  %865 = vmatpush1.msra.mxu0 0.0
  %866 = vmatprep.subr.mxu0 0.0
  %867 = vmatpush1.msra.mxu0 0.0
  %868 = vmatprep.subr.mxu0 0.0
  %869 = vmatpush1.msra.mxu0 0.0
  %870 = vmatprep.subr.mxu0 0.0
  %871 = vmatpush1.msra.mxu0 0.0
  %872 = vmatprep.subr.mxu0 0.0
  %873 = vmatpush1.msra.mxu0 0.0
  %874 = vmatprep.subr.mxu0 0.0
  %875 = vmatpush1.msra.mxu0 0.0
  %876 = vmatprep.subr.mxu0 0.0
  %877 = vmatpush1.msra.mxu0 0.0
  %878 = vmatprep.subr.mxu0 0.0
  %879 = vmatpush1.msra.mxu0 0.0
  %880 = vmatprep.subr.mxu0 0.0
  %881 = vmatpush1.msra.mxu0 0.0
  %882 = vmatprep.subr.mxu0 0.0
  %883 = vmatpush1.msra.mxu0 0.0
  %884 = vmatprep.subr.mxu0 0.0
  %885 = vmatpush1.msra.mxu0 0.0
  %886 = vmatprep.subr.mxu0 0.0
  %887 = vmatpush1.msra.mxu0 0.0
  %888 = vmatprep.subr.mxu0 0.0
  %889 = vmatpush1.msra.mxu0 0.0
  %890 = vmatprep.subr.mxu0 0.0
  %891 = vmatpush1.msra.mxu0 0.0
  %892 = vmatprep.subr.mxu0 0.0
  %893 = vmatpush1.msra.mxu0 0.0
  %894 = vmatprep.subr.mxu0 0.0
  %895 = vmatpush1.msra.mxu0 0.0
  %896 = vmatprep.subr.mxu0 0.0
  %897 = vmatpush1.msra.mxu0 0.0
  %898 = vmatprep.subr.mxu0 0.0
  %899 = vmatpush1.msra.mxu0 0.0
  %900 = vmatprep.subr.mxu0 0.0
  %901 = vmatpush1.msra.mxu0 0.0
  %902 = vmatprep.subr.mxu0 0.0
  %903 = vmatpush1.msra.mxu0 0.0
  %904 = vmatprep.mubr.f32.mxu0 0.0
  %905 = vmatmul.mubr.f32.gmra.mrb[0].mxu0 %v838
  %v906 = vpop.f32.mrb[0].mxu0
  %v907 = vadd.f32 0.0, %v906
  %v908 = vpop.f32.mrb[0].mxu0
  %909 = vdwg.mxu0
  %v910 = vadd.f32 %v836, %v907
  %v911 = vxor.u32 %v910, 2147483648
  %v912 = vmul.f32 %v911, 1.442695
  %v913 = vpow.pop %v912
  %v914 = vadd.f32 %v913, 1.0
  %v915 = vrcp.pop %v914
  %v916 = vmul.f32 1.0, %v915
  %v917 = vtanh.pop %v910
  %919 = vrot.lane.b32.xlu0 %v830, 32
  %v920 = vpop.permute.xlu0 %919
  %v922 = vmul.f32 %v916, %v920
  %924 = vrot.lane.b32.xlu0 %v917, 64
  %v925 = vpop.permute.xlu0 %924
  %v927 = vmul.f32 %v916, %v925
  %929 = vrot.lane.b32.xlu0 %v927, 32
  %v930 = vpop.permute.xlu0 %929
  %v932 = vadd.f32 %v922, %v930
  %v933 = vtanh.pop %v932
  %935 = vrot.lane.b32.xlu0 %v933, 64
  %v936 = vpop.permute.xlu0 %935
  %v938 = vmul.f32 %v916, %v936
  %v939 = vsel %vm46, 6, 1
  %vm940 = vcmp.lt.s32.totalorder %v939, %v43
  %v941 = vsel %vm940, 1, 0
  %v942 = vcvt.s32.f32 %v941
  %944 = vrot.lane.b32.xlu0 %v938, 32
  %v945 = vpop.permute.xlu0 %944
  %v947 = vmul.f32 %v942, %v945
  %v948 = vsub.f32 1.0, %v942
  %v949 = vmul.f32 %v948, %v823
  %v950 = vadd.f32 %v947, %v949
  %952 = vrot.lane.b32.xlu0 %v932, 96
  %v953 = vpop.permute.xlu0 %952
  %v955 = vmul.f32 %v942, %v953
  %v956 = vmul.f32 %v948, %v830
  %v957 = vadd.f32 %v955, %v956
  %v958 = vmul.f32 %v942, %v950
  %959 = vst.msk [vmem:[%s316] sm:$0xf] %vm182, %v958
  %960 = vst.msk [vmem:[%s314] sm:$0xf] %vm185, %v958
  %v961 = vld [vmem:[%s61] sm:$0xf]
  %v962 = vld [vmem:[%s1] sm:$0xf]
  %v963 = vsel %vm59, %v961, %v962
  %v965 = vsel %vm64, %v950, 0
  %967 = vmatprep.subr.mxu0 0.0
  %968 = vmatpush1.msra.mxu0 %v18
  %969 = vmatprep.subr.mxu0 0.0
  %970 = vmatpush1.msra.mxu0 %v19
  %971 = vmatprep.subr.mxu0 0.0
  %972 = vmatpush1.msra.mxu0 %v20
  %973 = vmatprep.subr.mxu0 0.0
  %974 = vmatpush1.msra.mxu0 %v21
  %975 = vmatprep.subr.mxu0 0.0
  %976 = vmatpush1.msra.mxu0 0.0
  %977 = vmatprep.subr.mxu0 0.0
  %978 = vmatpush1.msra.mxu0 0.0
  %979 = vmatprep.subr.mxu0 0.0
  %980 = vmatpush1.msra.mxu0 0.0
  %981 = vmatprep.subr.mxu0 0.0
  %982 = vmatpush1.msra.mxu0 0.0
  %983 = vmatprep.subr.mxu0 0.0
  %984 = vmatpush1.msra.mxu0 0.0
  %985 = vmatprep.subr.mxu0 0.0
  %986 = vmatpush1.msra.mxu0 0.0
  %987 = vmatprep.subr.mxu0 0.0
  %988 = vmatpush1.msra.mxu0 0.0
  %989 = vmatprep.subr.mxu0 0.0
  %990 = vmatpush1.msra.mxu0 0.0
  %991 = vmatprep.subr.mxu0 0.0
  %992 = vmatpush1.msra.mxu0 0.0
  %993 = vmatprep.subr.mxu0 0.0
  %994 = vmatpush1.msra.mxu0 0.0
  %995 = vmatprep.subr.mxu0 0.0
  %996 = vmatpush1.msra.mxu0 0.0
  %997 = vmatprep.subr.mxu0 0.0
  %998 = vmatpush1.msra.mxu0 0.0
  %999 = vmatprep.subr.mxu0 0.0
  %1000 = vmatpush1.msra.mxu0 0.0
  %1001 = vmatprep.subr.mxu0 0.0
  %1002 = vmatpush1.msra.mxu0 0.0
  %1003 = vmatprep.subr.mxu0 0.0
  %1004 = vmatpush1.msra.mxu0 0.0
  %1005 = vmatprep.subr.mxu0 0.0
  %1006 = vmatpush1.msra.mxu0 0.0
  %1007 = vmatprep.subr.mxu0 0.0
  %1008 = vmatpush1.msra.mxu0 0.0
  %1009 = vmatprep.subr.mxu0 0.0
  %1010 = vmatpush1.msra.mxu0 0.0
  %1011 = vmatprep.subr.mxu0 0.0
  %1012 = vmatpush1.msra.mxu0 0.0
  %1013 = vmatprep.subr.mxu0 0.0
  %1014 = vmatpush1.msra.mxu0 0.0
  %1015 = vmatprep.subr.mxu0 0.0
  %1016 = vmatpush1.msra.mxu0 0.0
  %1017 = vmatprep.subr.mxu0 0.0
  %1018 = vmatpush1.msra.mxu0 0.0
  %1019 = vmatprep.subr.mxu0 0.0
  %1020 = vmatpush1.msra.mxu0 0.0
  %1021 = vmatprep.subr.mxu0 0.0
  %1022 = vmatpush1.msra.mxu0 0.0
  %1023 = vmatprep.subr.mxu0 0.0
  %1024 = vmatpush1.msra.mxu0 0.0
  %1025 = vmatprep.subr.mxu0 0.0
  %1026 = vmatpush1.msra.mxu0 0.0
  %1027 = vmatprep.subr.mxu0 0.0
  %1028 = vmatpush1.msra.mxu0 0.0
  %1029 = vmatprep.subr.mxu0 0.0
  %1030 = vmatpush1.msra.mxu0 0.0
  %1031 = vmatprep.mubr.f32.mxu0 0.0
  %1032 = vmatmul.mubr.f32.gmra.mrb[0].mxu0 %v965
  %v1033 = vpop.f32.mrb[0].mxu0
  %v1034 = vadd.f32 0.0, %v1033
  %v1035 = vpop.f32.mrb[0].mxu0
  %1036 = vdwg.mxu0
  %v1037 = vadd.f32 %v963, %v1034
  %v1038 = vxor.u32 %v1037, 2147483648
  %v1039 = vmul.f32 %v1038, 1.442695
  %v1040 = vpow.pop %v1039
  %v1041 = vadd.f32 %v1040, 1.0
  %v1042 = vrcp.pop %v1041
  %v1043 = vmul.f32 1.0, %v1042
  %v1044 = vtanh.pop %v1037
  %1046 = vrot.lane.b32.xlu0 %v957, 32
  %v1047 = vpop.permute.xlu0 %1046
  %v1049 = vmul.f32 %v1043, %v1047
  %1051 = vrot.lane.b32.xlu0 %v1044, 64
  %v1052 = vpop.permute.xlu0 %1051
  %v1054 = vmul.f32 %v1043, %v1052
  %1056 = vrot.lane.b32.xlu0 %v1054, 32
  %v1057 = vpop.permute.xlu0 %1056
  %v1059 = vadd.f32 %v1049, %v1057
  %v1060 = vtanh.pop %v1059
  %1062 = vrot.lane.b32.xlu0 %v1060, 64
  %v1063 = vpop.permute.xlu0 %1062
  %v1065 = vmul.f32 %v1043, %v1063
  %v1066 = vsel %vm46, 7, 0
  %vm1067 = vcmp.lt.s32.totalorder %v1066, %v43
  %v1068 = vsel %vm1067, 1, 0
  %v1069 = vcvt.s32.f32 %v1068
  %1071 = vrot.lane.b32.xlu0 %v1065, 32
  %v1072 = vpop.permute.xlu0 %1071
  %v1074 = vmul.f32 %v1069, %v1072
  %v1075 = vsub.f32 1.0, %v1069
  %v1076 = vmul.f32 %v1075, %v950
  %v1077 = vadd.f32 %v1074, %v1076
  %v1078 = vmul.f32 %v1069, %v1077
  %1079 = vst.msk [vmem:[%s184] sm:$0xf] %vm182, %v1078
  %1080 = vst.msk [vmem:[%s3] sm:$0xf] %vm185, %v1078
  // Predicated region
  $region10: #{bilstm_forward.1} parent=0 // pred_check
    _
  $region11: #{bilstm_forward.1} parent=0 // pred_check_branch
    %1082 = sbr.rel (0) target = $region13
  $region12: #{bilstm_forward.1} parent=0 // pred_region
    _
  $region13: #{bilstm_forward.1} parent=0 // pred_fallthru
    _
  // Predicated region
  $region14: #{bilstm_forward.1} parent=0 // pred_check
    _
  $region15: #{bilstm_forward.1} parent=0 // pred_check_branch
    %1084 = sbr.rel (0) target = $region17
  $region16: #{bilstm_forward.1} parent=0 // pred_region
    _
  $region17: #{bilstm_forward.1} parent=0 // pred_fallthru
    _

</llo_original>
